<compile_context>
chip_gen: v6e
topology: v6e:2x2x1
jax: 0.10.0
libtpu: 0.0.40
codegen_flags: <defaults>
</compile_context>

<pallas_src>
import functools
import math

import jax
import jax.numpy as jnp
from jax.experimental import pallas as pl
from jax.experimental.pallas import tpu as pltpu


def _encoder_stack_kernel(x_ref, wqkv_ref, bqkv_ref, wo_ref, bo_ref,
                          g1_ref, beta1_ref, w1_ref, b1_ref,
                          w2_ref, b2_ref, g2_ref, beta2_ref,
                          out_ref, act_ref,
                          *, num_heads, emb_dim, seq_len, block_n, num_layers):
    """grid = (batch_tile, layer). One step = one layer on one batch tile."""
    eps = 1e-5
    E = emb_dim
    H = num_heads
    d = E // H
    K = seq_len
    BN = block_n
    M = BN * K

    layer = pl.program_id(1)

    # First layer of this batch tile: load input into the resident f32 carry.
    @pl.when(layer == 0)
    def _():
        act_ref[...] = x_ref[...].reshape(M, E).astype(jnp.float32)

    x = act_ref[...]                                     # (M, E) f32
    x_bf = x.astype(jnp.bfloat16)

    # ---- packed QKV projection on the flattened (batch*seq, E) slab ----
    # 1/sqrt(head_dim) is already folded into the Q columns of wqkv / bqkv.
    qkv = jnp.dot(x_bf, wqkv_ref[...], preferred_element_type=jnp.float32)
    qkv = qkv + bqkv_ref[...]                            # (M, 3E) f32
    q = qkv[:, :E].reshape(BN, K, E)
    k = qkv[:, E:2 * E].reshape(BN, K, E)
    v = qkv[:, 2 * E:].reshape(BN, K, E)

    # ---- attention: batched over batch dim, head-concat folded into W_O ----
    attn = jnp.zeros((M, E), jnp.float32)
    for h in range(H):                                   # small static unroll
        sl = slice(h * d, (h + 1) * d)
        qh = q[:, :, sl].astype(jnp.bfloat16)            # (BN, K, d)
        kh = k[:, :, sl].astype(jnp.bfloat16)
        vh = v[:, :, sl].astype(jnp.bfloat16)
        s = jnp.einsum('bqd,bkd->bqk', qh, kh,
                       preferred_element_type=jnp.float32)       # (BN, K, K)
        s = s - jnp.max(s, axis=-1, keepdims=True)
        p = jnp.exp(s)
        p = p * pl.reciprocal(jnp.sum(p, axis=-1, keepdims=True), approx=True)
        ch = jnp.einsum('bqk,bkd->bqd', p.astype(jnp.bfloat16), vh,
                        preferred_element_type=jnp.float32)      # (BN, K, d)
        attn = attn + jnp.dot(ch.reshape(M, d).astype(jnp.bfloat16),
                              wo_ref[h],                 # (d, E) slice of W_O
                              preferred_element_type=jnp.float32)
    attn = attn + bo_ref[...]

    # dropout(p=0) -> identity ; residual + LayerNorm 1 (f32)
    y = x + attn
    mu = jnp.mean(y, axis=-1, keepdims=True)
    var = jnp.mean((y - mu) ** 2, axis=-1, keepdims=True)
    y = (y - mu) * jax.lax.rsqrt(var + eps) * g1_ref[...] + beta1_ref[...]

    # ---- feed forward: Linear -> ReLU -> Linear (bf16 MXU, f32 accumulate) ----
    h1 = jnp.dot(y.astype(jnp.bfloat16), w1_ref[...],
                 preferred_element_type=jnp.float32) + b1_ref[...]
    h1 = jnp.maximum(h1, 0.0)
    h2 = jnp.dot(h1.astype(jnp.bfloat16), w2_ref[...],
                 preferred_element_type=jnp.float32) + b2_ref[...]

    # dropout(p=0) -> identity ; residual + LayerNorm 2
    z = h2 + y
    mu2 = jnp.mean(z, axis=-1, keepdims=True)
    var2 = jnp.mean((z - mu2) ** 2, axis=-1, keepdims=True)
    out = (z - mu2) * jax.lax.rsqrt(var2 + eps) * g2_ref[...] + beta2_ref[...]

    act_ref[...] = out                                   # carry to next layer

    @pl.when(layer == num_layers - 1)
    def _():
        out_ref[...] = out.reshape(BN, K, E).astype(out_ref.dtype)


def encoder_forward(x, params, num_heads, *, block_rows=512):
    """Full encoder stack in ONE pallas_call."""
    N, K, E = x.shape
    L = params["wqkv"].shape[0]
    F = params["w1"].shape[2]
    H = num_heads
    d = E // H

    # batch-tile size: aim for ~block_rows rows per block (aligned to batches)
    bn = max(1, min(N, block_rows // max(K, 1)))
    while N % bn != 0:
        bn -= 1
    num_b = N // bn

    kern = functools.partial(_encoder_stack_kernel, num_heads=H, emb_dim=E,
                             seq_len=K, block_n=bn, num_layers=L)

    def wspec(shape):
        # one layer slice of a stacked (L, *shape) parameter
        return pl.BlockSpec((None,) + shape,
                            lambda b, l, _n=len(shape): (l,) + (0,) * _n)

    in_specs = [
        pl.BlockSpec((bn, K, E), lambda b, l: (b, 0, 0)),  # x (DMA'd once / tile)
        wspec((E, 3 * E)),    # wqkv  (bf16, Q-scale folded in)
        wspec((1, 3 * E)),    # bqkv  (f32)
        wspec((H, d, E)),     # wo    (bf16, reshaped for per-head accumulation)
        wspec((1, E)),        # bo
        wspec((1, E)),        # ln1 gamma
        wspec((1, E)),        # ln1 beta
        wspec((E, F)),        # ff w1 (bf16)
        wspec((1, F)),        # ff b1
        wspec((F, E)),        # ff w2 (bf16)
        wspec((1, E)),        # ff b2
        wspec((1, E)),        # ln2 gamma
        wspec((1, E)),        # ln2 beta
    ]
    out_spec = pl.BlockSpec((bn, K, E), lambda b, l: (b, 0, 0))

    # VMEM budget: double-buffered bf16 weight blocks + activations + scratch.
    wbytes = 2 * 2 * (E * 3 * E + E * E + E * F + F * E)          # bf16 x 2 bufs
    abytes = 3 * bn * K * E * 4 + 2 * bn * K * (3 * E + F) * 4    # f32 acts/tmp
    vmem_limit = int(min(100 * 2**20, max(32 * 2**20, 4 * (wbytes + abytes))))

    return pl.pallas_call(
        kern,
        out_shape=jax.ShapeDtypeStruct((N, K, E), x.dtype),
        grid=(num_b, L),
        in_specs=in_specs,
        out_specs=out_spec,
        scratch_shapes=[pltpu.VMEM((bn * K, E), jnp.float32)],    # layer carry
        compiler_params=pltpu.CompilerParams(
            dimension_semantics=("parallel", "arbitrary"),
            vmem_limit_bytes=vmem_limit),
    )(x, params["wqkv"], params["bqkv"], params["wo"], params["bo"],
      params["g1"], params["beta1"], params["w1"], params["b1"],
      params["w2"], params["b2"], params["g2"], params["beta2"])


def init_encoder_params(key, num_layers, num_heads, emb_dim, ff_dim):
    """Stacked (L, ...) parameters, pre-transposed to (in, out) layout.

    Matches nn.MultiheadAttention's packed in_proj (Q|K|V) and out_proj plus
    two LayerNorms and the assumed Linear->ReLU->Linear FeedForward.
    The attention scale 1/sqrt(head_dim) is folded into the Q weights/bias;
    matmul weights are stored in bf16 (f32 accumulation in-kernel).
    """
    E, F, H, L = emb_dim, ff_dim, num_heads, num_layers
    d = E // H
    scale = 1.0 / math.sqrt(d)
    s = 0.05
    ks = jax.random.split(key, 8)

    def rnd(k, shape):
        return s * jax.random.normal(k, (L,) + shape, jnp.float32)

    wqkv = rnd(ks[0], (E, 3 * E))
    bqkv = rnd(ks[1], (1, 3 * E))
    wqkv = wqkv.at[:, :, :E].multiply(scale)   # fold scale into Q columns
    bqkv = bqkv.at[:, :, :E].multiply(scale)   # ... and Q bias

    wo = rnd(ks[2], (E, E)).reshape(L, H, d, E)  # (in=E split into H*d, out=E)

    return {
        "wqkv": wqkv.astype(jnp.bfloat16),
        "bqkv": bqkv,
        "wo": wo.astype(jnp.bfloat16),
        "bo": rnd(ks[3], (1, E)),
        "g1": jnp.ones((L, 1, E), jnp.float32),
        "beta1": jnp.zeros((L, 1, E), jnp.float32),
        "w1": rnd(ks[4], (E, F)).astype(jnp.bfloat16),
        "b1": rnd(ks[5], (1, F)),
        "w2": rnd(ks[6], (F, E)).astype(jnp.bfloat16),
        "b2": rnd(ks[7], (1, E)),
        "g2": jnp.ones((L, 1, E), jnp.float32),
        "beta2": jnp.zeros((L, 1, E), jnp.float32),
    }


if __name__ == "__main__":
    # Small shapes consistent with the module: (N, K, M) = (2, 8, 32)
    N, K, E = 2, 8, 32
    NUM_HEADS = 4
    FF_DIM = 64
    NUM_LAYERS = 2

    key = jax.random.PRNGKey(0)
    kx, kp = jax.random.split(key)
    x = jax.random.normal(kx, (N, K, E), jnp.float32)
    params = init_encoder_params(kp, NUM_LAYERS, NUM_HEADS, E, FF_DIM)

    out = encoder_forward(x, params, NUM_HEADS)
    out = jax.block_until_ready(out)
    assert out.shape == (N, K, E) and out.dtype == jnp.float32
    print("KERNEL_OK")
</pallas_src>

<mosaic_0001>
module attributes {stable_mosaic.version = 11 : i64} {
  func.func @_encoder_stack_kernel(%arg0: i32, %arg1: i32, %arg2: memref<2x8x32xf32, #tpu.memory_space<vmem>>, %arg3: memref<1x32x96xbf16, #tpu.memory_space<vmem>>, %arg4: memref<1x1x96xf32, #tpu.memory_space<vmem>>, %arg5: memref<1x4x8x32xbf16, #tpu.memory_space<vmem>>, %arg6: memref<1x1x32xf32, #tpu.memory_space<vmem>>, %arg7: memref<1x1x32xf32, #tpu.memory_space<vmem>>, %arg8: memref<1x1x32xf32, #tpu.memory_space<vmem>>, %arg9: memref<1x32x64xbf16, #tpu.memory_space<vmem>>, %arg10: memref<1x1x64xf32, #tpu.memory_space<vmem>>, %arg11: memref<1x64x32xbf16, #tpu.memory_space<vmem>>, %arg12: memref<1x1x32xf32, #tpu.memory_space<vmem>>, %arg13: memref<1x1x32xf32, #tpu.memory_space<vmem>>, %arg14: memref<1x1x32xf32, #tpu.memory_space<vmem>>, %arg15: memref<2x8x32xf32, #tpu.memory_space<vmem>>, %arg16: memref<16x32xf32, #tpu.memory_space<vmem>>) attributes {dimension_semantics = [#tpu.dimension_semantics<parallel>, #tpu.dimension_semantics<arbitrary>], iteration_bounds = array<i64: 1, 2>, scalar_prefetch = 0 : i64, scratch_operands = 1 : i64, tpu.core_type = #tpu.core_type<tc>, window_params = [{transform_indices = @transform_0, window_bounds = array<i64: 2, 8, 32>}, {transform_indices = @transform_1, window_bounds = array<i64: 1, 32, 96>}, {transform_indices = @transform_2, window_bounds = array<i64: 1, 1, 96>}, {transform_indices = @transform_3, window_bounds = array<i64: 1, 4, 8, 32>}, {transform_indices = @transform_4, window_bounds = array<i64: 1, 1, 32>}, {transform_indices = @transform_5, window_bounds = array<i64: 1, 1, 32>}, {transform_indices = @transform_6, window_bounds = array<i64: 1, 1, 32>}, {transform_indices = @transform_7, window_bounds = array<i64: 1, 32, 64>}, {transform_indices = @transform_8, window_bounds = array<i64: 1, 1, 64>}, {transform_indices = @transform_9, window_bounds = array<i64: 1, 64, 32>}, {transform_indices = @transform_10, window_bounds = array<i64: 1, 1, 32>}, {transform_indices = @transform_11, window_bounds = array<i64: 1, 1, 32>}, {transform_indices = @transform_12, window_bounds = array<i64: 1, 1, 32>}, {transform_indices = @transform_13, window_bounds = array<i64: 2, 8, 32>}]} {
    %c0_i32 = arith.constant 0 : i32
    %0 = arith.cmpi eq, %arg1, %c0_i32 : i32
    %1 = arith.extui %0 : i1 to i32
    %c0_i32_0 = arith.constant 0 : i32
    %2 = arith.cmpi ne, %1, %c0_i32_0 : i32
    scf.if %2 {
      %c0_85 = arith.constant 0 : index
      %c0_86 = arith.constant 0 : index
      %c0_87 = arith.constant 0 : index
      %199 = vector.load %arg2[%c0_85, %c0_86, %c0_87] : memref<2x8x32xf32, #tpu.memory_space<vmem>>, vector<2x8x32xf32>
      %200 = vector.shape_cast %199 : vector<2x8x32xf32> to vector<16x32xf32>
      %c0_88 = arith.constant 0 : index
      %c0_89 = arith.constant 0 : index
      %201 = vector.load %arg16[%c0_88, %c0_89] : memref<16x32xf32, #tpu.memory_space<vmem>>, vector<16x32xf32>
      tpu.vector_store %arg16[%c0_88, %c0_89], %200 {strides = array<i32>} : memref<16x32xf32, #tpu.memory_space<vmem>>, vector<16x32xf32>,
    } else {
    }
    %c0 = arith.constant 0 : index
    %c0_1 = arith.constant 0 : index
    %3 = vector.load %arg16[%c0, %c0_1] : memref<16x32xf32, #tpu.memory_space<vmem>>, vector<16x32xf32>
    %4 = arith.truncf %3 : vector<16x32xf32> to vector<16x32xbf16>
    %c0_2 = arith.constant 0 : index
    %c0_3 = arith.constant 0 : index
    %c0_4 = arith.constant 0 : index
    %5 = vector.load %arg3[%c0_2, %c0_3, %c0_4] : memref<1x32x96xbf16, #tpu.memory_space<vmem>>, vector<1x32x96xbf16>
    %6 = vector.shape_cast %5 : vector<1x32x96xbf16> to vector<32x96xbf16>
    %cst = arith.constant dense<0.000000e+00> : vector<16x96xf32>
    %7 = tpu.matmul %4, %6, %cst {dimension_numbers = #tpu.dot_dimension_numbers<[1], [0], [0], [1], [0, 0, 1, 1], [], []>} : vector<16x32xbf16>, vector<32x96xbf16>, vector<16x96xf32> -> vector<16x96xf32>
    %c0_5 = arith.constant 0 : index
    %c0_6 = arith.constant 0 : index
    %c0_7 = arith.constant 0 : index
    %8 = vector.load %arg4[%c0_5, %c0_6, %c0_7] : memref<1x1x96xf32, #tpu.memory_space<vmem>>, vector<1x1x96xf32>
    %9 = vector.shape_cast %8 : vector<1x1x96xf32> to vector<1x96xf32>
    %10 = vector.broadcast %9 : vector<1x96xf32> to vector<16x96xf32>
    %11 = arith.addf %7, %10 : vector<16x96xf32>
    %12 = vector.extract_strided_slice %11 {offsets = [0, 0], sizes = [16, 32], strides = [1, 1]} : vector<16x96xf32> to vector<16x32xf32>
    %13 = vector.shape_cast %12 : vector<16x32xf32> to vector<2x8x32xf32>
    %14 = vector.extract_strided_slice %11 {offsets = [0, 32], sizes = [16, 32], strides = [1, 1]} : vector<16x96xf32> to vector<16x32xf32>
    %15 = vector.shape_cast %14 : vector<16x32xf32> to vector<2x8x32xf32>
    %16 = vector.extract_strided_slice %11 {offsets = [0, 64], sizes = [16, 32], strides = [1, 1]} : vector<16x96xf32> to vector<16x32xf32>
    %17 = vector.shape_cast %16 : vector<16x32xf32> to vector<2x8x32xf32>
    %cst_8 = arith.constant 0.000000e+00 : f32
    %18 = vector.broadcast %cst_8 : f32 to vector<16x32xf32>
    %19 = vector.extract_strided_slice %13 {offsets = [0, 0, 0], sizes = [2, 8, 8], strides = [1, 1, 1]} : vector<2x8x32xf32> to vector<2x8x8xf32>
    %20 = arith.truncf %19 : vector<2x8x8xf32> to vector<2x8x8xbf16>
    %21 = vector.extract_strided_slice %15 {offsets = [0, 0, 0], sizes = [2, 8, 8], strides = [1, 1, 1]} : vector<2x8x32xf32> to vector<2x8x8xf32>
    %22 = arith.truncf %21 : vector<2x8x8xf32> to vector<2x8x8xbf16>
    %23 = vector.extract_strided_slice %17 {offsets = [0, 0, 0], sizes = [2, 8, 8], strides = [1, 1, 1]} : vector<2x8x32xf32> to vector<2x8x8xf32>
    %24 = arith.truncf %23 : vector<2x8x8xf32> to vector<2x8x8xbf16>
    "tpu.trace_start"() <{level = 10 : i32, message = "bqd,bkd->bqk"}> : () -> ()
    %cst_9 = arith.constant dense<0.000000e+00> : vector<2x8x8xf32>
    %25 = tpu.matmul %20, %22, %cst_9 {dimension_numbers = #tpu.dot_dimension_numbers<[2], [2], [1], [1], [0, 0, 0, 1, 1, 1], [0], [0]>} : vector<2x8x8xbf16>, vector<2x8x8xbf16>, vector<2x8x8xf32> -> vector<2x8x8xf32>
    "tpu.trace_stop"() : () -> ()
    %cst_10 = arith.constant dense<0xFF800000> : vector<2x8xf32>
    %26 = vector.multi_reduction <maximumf>, %25, %cst_10 [2] : vector<2x8x8xf32> to vector<2x8xf32>
    %27 = vector.shape_cast %26 : vector<2x8xf32> to vector<2x8x1xf32>
    %28 = vector.broadcast %27 : vector<2x8x1xf32> to vector<2x8x8xf32>
    %29 = arith.subf %25, %28 : vector<2x8x8xf32>
    %30 = math.exp %29 : vector<2x8x8xf32>
    %cst_11 = arith.constant dense<0.000000e+00> : vector<2x8xf32>
    %31 = vector.multi_reduction <add>, %30, %cst_11 [2] : vector<2x8x8xf32> to vector<2x8xf32>
    %32 = vector.shape_cast %31 : vector<2x8xf32> to vector<2x8x1xf32>
    %33 = tpu.reciprocal %32 {approx = true} : vector<2x8x1xf32> -> vector<2x8x1xf32>
    %34 = vector.broadcast %33 : vector<2x8x1xf32> to vector<2x8x8xf32>
    %35 = arith.mulf %30, %34 : vector<2x8x8xf32>
    %36 = arith.truncf %35 : vector<2x8x8xf32> to vector<2x8x8xbf16>
    "tpu.trace_start"() <{level = 10 : i32, message = "bqk,bkd->bqd"}> : () -> ()
    %cst_12 = arith.constant dense<0.000000e+00> : vector<2x8x8xf32>
    %37 = tpu.matmul %36, %24, %cst_12 {dimension_numbers = #tpu.dot_dimension_numbers<[2], [1], [1], [2], [0, 0, 0, 1, 1, 2], [0], [0]>} : vector<2x8x8xbf16>, vector<2x8x8xbf16>, vector<2x8x8xf32> -> vector<2x8x8xf32>
    "tpu.trace_stop"() : () -> ()
    %38 = vector.shape_cast %37 : vector<2x8x8xf32> to vector<16x8xf32>
    %39 = arith.truncf %38 : vector<16x8xf32> to vector<16x8xbf16>
    %c0_13 = arith.constant 0 : index
    %c0_14 = arith.constant 0 : index
    %c0_15 = arith.constant 0 : index
    %c0_16 = arith.constant 0 : index
    %40 = vector.load %arg5[%c0_13, %c0_14, %c0_15, %c0_16] : memref<1x4x8x32xbf16, #tpu.memory_space<vmem>>, vector<1x1x8x32xbf16>
    %41 = vector.shape_cast %40 : vector<1x1x8x32xbf16> to vector<8x32xbf16>
    %cst_17 = arith.constant dense<0.000000e+00> : vector<16x32xf32>
    %42 = tpu.matmul %39, %41, %cst_17 {dimension_numbers = #tpu.dot_dimension_numbers<[1], [0], [0], [1], [0, 0, 1, 1], [], []>} : vector<16x8xbf16>, vector<8x32xbf16>, vector<16x32xf32> -> vector<16x32xf32>
    %43 = arith.addf %18, %42 : vector<16x32xf32>
    %44 = vector.extract_strided_slice %13 {offsets = [0, 0, 8], sizes = [2, 8, 8], strides = [1, 1, 1]} : vector<2x8x32xf32> to vector<2x8x8xf32>
    %45 = arith.truncf %44 : vector<2x8x8xf32> to vector<2x8x8xbf16>
    %46 = vector.extract_strided_slice %15 {offsets = [0, 0, 8], sizes = [2, 8, 8], strides = [1, 1, 1]} : vector<2x8x32xf32> to vector<2x8x8xf32>
    %47 = arith.truncf %46 : vector<2x8x8xf32> to vector<2x8x8xbf16>
    %48 = vector.extract_strided_slice %17 {offsets = [0, 0, 8], sizes = [2, 8, 8], strides = [1, 1, 1]} : vector<2x8x32xf32> to vector<2x8x8xf32>
    %49 = arith.truncf %48 : vector<2x8x8xf32> to vector<2x8x8xbf16>
    "tpu.trace_start"() <{level = 10 : i32, message = "bqd,bkd->bqk"}> : () -> ()
    %cst_18 = arith.constant dense<0.000000e+00> : vector<2x8x8xf32>
    %50 = tpu.matmul %45, %47, %cst_18 {dimension_numbers = #tpu.dot_dimension_numbers<[2], [2], [1], [1], [0, 0, 0, 1, 1, 1], [0], [0]>} : vector<2x8x8xbf16>, vector<2x8x8xbf16>, vector<2x8x8xf32> -> vector<2x8x8xf32>
    "tpu.trace_stop"() : () -> ()
    %cst_19 = arith.constant dense<0xFF800000> : vector<2x8xf32>
    %51 = vector.multi_reduction <maximumf>, %50, %cst_19 [2] : vector<2x8x8xf32> to vector<2x8xf32>
    %52 = vector.shape_cast %51 : vector<2x8xf32> to vector<2x8x1xf32>
    %53 = vector.broadcast %52 : vector<2x8x1xf32> to vector<2x8x8xf32>
    %54 = arith.subf %50, %53 : vector<2x8x8xf32>
    %55 = math.exp %54 : vector<2x8x8xf32>
    %cst_20 = arith.constant dense<0.000000e+00> : vector<2x8xf32>
    %56 = vector.multi_reduction <add>, %55, %cst_20 [2] : vector<2x8x8xf32> to vector<2x8xf32>
    %57 = vector.shape_cast %56 : vector<2x8xf32> to vector<2x8x1xf32>
    %58 = tpu.reciprocal %57 {approx = true} : vector<2x8x1xf32> -> vector<2x8x1xf32>
    %59 = vector.broadcast %58 : vector<2x8x1xf32> to vector<2x8x8xf32>
    %60 = arith.mulf %55, %59 : vector<2x8x8xf32>
    %61 = arith.truncf %60 : vector<2x8x8xf32> to vector<2x8x8xbf16>
    "tpu.trace_start"() <{level = 10 : i32, message = "bqk,bkd->bqd"}> : () -> ()
    %cst_21 = arith.constant dense<0.000000e+00> : vector<2x8x8xf32>
    %62 = tpu.matmul %61, %49, %cst_21 {dimension_numbers = #tpu.dot_dimension_numbers<[2], [1], [1], [2], [0, 0, 0, 1, 1, 2], [0], [0]>} : vector<2x8x8xbf16>, vector<2x8x8xbf16>, vector<2x8x8xf32> -> vector<2x8x8xf32>
    "tpu.trace_stop"() : () -> ()
    %63 = vector.shape_cast %62 : vector<2x8x8xf32> to vector<16x8xf32>
    %64 = arith.truncf %63 : vector<16x8xf32> to vector<16x8xbf16>
    %c0_22 = arith.constant 0 : index
    %c1 = arith.constant 1 : index
    %c0_23 = arith.constant 0 : index
    %c0_24 = arith.constant 0 : index
    %65 = vector.load %arg5[%c0_22, %c1, %c0_23, %c0_24] : memref<1x4x8x32xbf16, #tpu.memory_space<vmem>>, vector<1x1x8x32xbf16>
    %66 = vector.shape_cast %65 : vector<1x1x8x32xbf16> to vector<8x32xbf16>
    %cst_25 = arith.constant dense<0.000000e+00> : vector<16x32xf32>
    %67 = tpu.matmul %64, %66, %cst_25 {dimension_numbers = #tpu.dot_dimension_numbers<[1], [0], [0], [1], [0, 0, 1, 1], [], []>} : vector<16x8xbf16>, vector<8x32xbf16>, vector<16x32xf32> -> vector<16x32xf32>
    %68 = arith.addf %43, %67 : vector<16x32xf32>
    %69 = vector.extract_strided_slice %13 {offsets = [0, 0, 16], sizes = [2, 8, 8], strides = [1, 1, 1]} : vector<2x8x32xf32> to vector<2x8x8xf32>
    %70 = arith.truncf %69 : vector<2x8x8xf32> to vector<2x8x8xbf16>
    %71 = vector.extract_strided_slice %15 {offsets = [0, 0, 16], sizes = [2, 8, 8], strides = [1, 1, 1]} : vector<2x8x32xf32> to vector<2x8x8xf32>
    %72 = arith.truncf %71 : vector<2x8x8xf32> to vector<2x8x8xbf16>
    %73 = vector.extract_strided_slice %17 {offsets = [0, 0, 16], sizes = [2, 8, 8], strides = [1, 1, 1]} : vector<2x8x32xf32> to vector<2x8x8xf32>
    %74 = arith.truncf %73 : vector<2x8x8xf32> to vector<2x8x8xbf16>
    "tpu.trace_start"() <{level = 10 : i32, message = "bqd,bkd->bqk"}> : () -> ()
    %cst_26 = arith.constant dense<0.000000e+00> : vector<2x8x8xf32>
    %75 = tpu.matmul %70, %72, %cst_26 {dimension_numbers = #tpu.dot_dimension_numbers<[2], [2], [1], [1], [0, 0, 0, 1, 1, 1], [0], [0]>} : vector<2x8x8xbf16>, vector<2x8x8xbf16>, vector<2x8x8xf32> -> vector<2x8x8xf32>
    "tpu.trace_stop"() : () -> ()
    %cst_27 = arith.constant dense<0xFF800000> : vector<2x8xf32>
    %76 = vector.multi_reduction <maximumf>, %75, %cst_27 [2] : vector<2x8x8xf32> to vector<2x8xf32>
    %77 = vector.shape_cast %76 : vector<2x8xf32> to vector<2x8x1xf32>
    %78 = vector.broadcast %77 : vector<2x8x1xf32> to vector<2x8x8xf32>
    %79 = arith.subf %75, %78 : vector<2x8x8xf32>
    %80 = math.exp %79 : vector<2x8x8xf32>
    %cst_28 = arith.constant dense<0.000000e+00> : vector<2x8xf32>
    %81 = vector.multi_reduction <add>, %80, %cst_28 [2] : vector<2x8x8xf32> to vector<2x8xf32>
    %82 = vector.shape_cast %81 : vector<2x8xf32> to vector<2x8x1xf32>
    %83 = tpu.reciprocal %82 {approx = true} : vector<2x8x1xf32> -> vector<2x8x1xf32>
    %84 = vector.broadcast %83 : vector<2x8x1xf32> to vector<2x8x8xf32>
    %85 = arith.mulf %80, %84 : vector<2x8x8xf32>
    %86 = arith.truncf %85 : vector<2x8x8xf32> to vector<2x8x8xbf16>
    "tpu.trace_start"() <{level = 10 : i32, message = "bqk,bkd->bqd"}> : () -> ()
    %cst_29 = arith.constant dense<0.000000e+00> : vector<2x8x8xf32>
    %87 = tpu.matmul %86, %74, %cst_29 {dimension_numbers = #tpu.dot_dimension_numbers<[2], [1], [1], [2], [0, 0, 0, 1, 1, 2], [0], [0]>} : vector<2x8x8xbf16>, vector<2x8x8xbf16>, vector<2x8x8xf32> -> vector<2x8x8xf32>
    "tpu.trace_stop"() : () -> ()
    %88 = vector.shape_cast %87 : vector<2x8x8xf32> to vector<16x8xf32>
    %89 = arith.truncf %88 : vector<16x8xf32> to vector<16x8xbf16>
    %c0_30 = arith.constant 0 : index
    %c2 = arith.constant 2 : index
    %c0_31 = arith.constant 0 : index
    %c0_32 = arith.constant 0 : index
    %90 = vector.load %arg5[%c0_30, %c2, %c0_31, %c0_32] : memref<1x4x8x32xbf16, #tpu.memory_space<vmem>>, vector<1x1x8x32xbf16>
    %91 = vector.shape_cast %90 : vector<1x1x8x32xbf16> to vector<8x32xbf16>
    %cst_33 = arith.constant dense<0.000000e+00> : vector<16x32xf32>
    %92 = tpu.matmul %89, %91, %cst_33 {dimension_numbers = #tpu.dot_dimension_numbers<[1], [0], [0], [1], [0, 0, 1, 1], [], []>} : vector<16x8xbf16>, vector<8x32xbf16>, vector<16x32xf32> -> vector<16x32xf32>
    %93 = arith.addf %68, %92 : vector<16x32xf32>
    %94 = vector.extract_strided_slice %13 {offsets = [0, 0, 24], sizes = [2, 8, 8], strides = [1, 1, 1]} : vector<2x8x32xf32> to vector<2x8x8xf32>
    %95 = arith.truncf %94 : vector<2x8x8xf32> to vector<2x8x8xbf16>
    %96 = vector.extract_strided_slice %15 {offsets = [0, 0, 24], sizes = [2, 8, 8], strides = [1, 1, 1]} : vector<2x8x32xf32> to vector<2x8x8xf32>
    %97 = arith.truncf %96 : vector<2x8x8xf32> to vector<2x8x8xbf16>
    %98 = vector.extract_strided_slice %17 {offsets = [0, 0, 24], sizes = [2, 8, 8], strides = [1, 1, 1]} : vector<2x8x32xf32> to vector<2x8x8xf32>
    %99 = arith.truncf %98 : vector<2x8x8xf32> to vector<2x8x8xbf16>
    "tpu.trace_start"() <{level = 10 : i32, message = "bqd,bkd->bqk"}> : () -> ()
    %cst_34 = arith.constant dense<0.000000e+00> : vector<2x8x8xf32>
    %100 = tpu.matmul %95, %97, %cst_34 {dimension_numbers = #tpu.dot_dimension_numbers<[2], [2], [1], [1], [0, 0, 0, 1, 1, 1], [0], [0]>} : vector<2x8x8xbf16>, vector<2x8x8xbf16>, vector<2x8x8xf32> -> vector<2x8x8xf32>
    "tpu.trace_stop"() : () -> ()
    %cst_35 = arith.constant dense<0xFF800000> : vector<2x8xf32>
    %101 = vector.multi_reduction <maximumf>, %100, %cst_35 [2] : vector<2x8x8xf32> to vector<2x8xf32>
    %102 = vector.shape_cast %101 : vector<2x8xf32> to vector<2x8x1xf32>
    %103 = vector.broadcast %102 : vector<2x8x1xf32> to vector<2x8x8xf32>
    %104 = arith.subf %100, %103 : vector<2x8x8xf32>
    %105 = math.exp %104 : vector<2x8x8xf32>
    %cst_36 = arith.constant dense<0.000000e+00> : vector<2x8xf32>
    %106 = vector.multi_reduction <add>, %105, %cst_36 [2] : vector<2x8x8xf32> to vector<2x8xf32>
    %107 = vector.shape_cast %106 : vector<2x8xf32> to vector<2x8x1xf32>
    %108 = tpu.reciprocal %107 {approx = true} : vector<2x8x1xf32> -> vector<2x8x1xf32>
    %109 = vector.broadcast %108 : vector<2x8x1xf32> to vector<2x8x8xf32>
    %110 = arith.mulf %105, %109 : vector<2x8x8xf32>
    %111 = arith.truncf %110 : vector<2x8x8xf32> to vector<2x8x8xbf16>
    "tpu.trace_start"() <{level = 10 : i32, message = "bqk,bkd->bqd"}> : () -> ()
    %cst_37 = arith.constant dense<0.000000e+00> : vector<2x8x8xf32>
    %112 = tpu.matmul %111, %99, %cst_37 {dimension_numbers = #tpu.dot_dimension_numbers<[2], [1], [1], [2], [0, 0, 0, 1, 1, 2], [0], [0]>} : vector<2x8x8xbf16>, vector<2x8x8xbf16>, vector<2x8x8xf32> -> vector<2x8x8xf32>
    "tpu.trace_stop"() : () -> ()
    %113 = vector.shape_cast %112 : vector<2x8x8xf32> to vector<16x8xf32>
    %114 = arith.truncf %113 : vector<16x8xf32> to vector<16x8xbf16>
    %c0_38 = arith.constant 0 : index
    %c3 = arith.constant 3 : index
    %c0_39 = arith.constant 0 : index
    %c0_40 = arith.constant 0 : index
    %115 = vector.load %arg5[%c0_38, %c3, %c0_39, %c0_40] : memref<1x4x8x32xbf16, #tpu.memory_space<vmem>>, vector<1x1x8x32xbf16>
    %116 = vector.shape_cast %115 : vector<1x1x8x32xbf16> to vector<8x32xbf16>
    %cst_41 = arith.constant dense<0.000000e+00> : vector<16x32xf32>
    %117 = tpu.matmul %114, %116, %cst_41 {dimension_numbers = #tpu.dot_dimension_numbers<[1], [0], [0], [1], [0, 0, 1, 1], [], []>} : vector<16x8xbf16>, vector<8x32xbf16>, vector<16x32xf32> -> vector<16x32xf32>
    %118 = arith.addf %93, %117 : vector<16x32xf32>
    %c0_42 = arith.constant 0 : index
    %c0_43 = arith.constant 0 : index
    %c0_44 = arith.constant 0 : index
    %119 = vector.load %arg6[%c0_42, %c0_43, %c0_44] : memref<1x1x32xf32, #tpu.memory_space<vmem>>, vector<1x1x32xf32>
    %120 = vector.shape_cast %119 : vector<1x1x32xf32> to vector<1x32xf32>
    %121 = vector.broadcast %120 : vector<1x32xf32> to vector<16x32xf32>
    %122 = arith.addf %118, %121 : vector<16x32xf32>
    %123 = arith.addf %3, %122 : vector<16x32xf32>
    %cst_45 = arith.constant dense<0.000000e+00> : vector<16xf32>
    %124 = vector.multi_reduction <add>, %123, %cst_45 [1] : vector<16x32xf32> to vector<16xf32>
    %125 = vector.shape_cast %124 : vector<16xf32> to vector<16x1xf32>
    %cst_46 = arith.constant 3.200000e+01 : f32
    %126 = vector.broadcast %cst_46 : f32 to vector<16x1xf32>
    %127 = arith.divf %125, %126 : vector<16x1xf32>
    %128 = vector.broadcast %127 : vector<16x1xf32> to vector<16x32xf32>
    %129 = arith.subf %123, %128 : vector<16x32xf32>
    %130 = arith.mulf %129, %129 : vector<16x32xf32>
    %cst_47 = arith.constant dense<0.000000e+00> : vector<16xf32>
    %131 = vector.multi_reduction <add>, %130, %cst_47 [1] : vector<16x32xf32> to vector<16xf32>
    %132 = vector.shape_cast %131 : vector<16xf32> to vector<16x1xf32>
    %cst_48 = arith.constant 3.200000e+01 : f32
    %133 = vector.broadcast %cst_48 : f32 to vector<16x1xf32>
    %134 = arith.divf %132, %133 : vector<16x1xf32>
    %135 = vector.broadcast %127 : vector<16x1xf32> to vector<16x32xf32>
    %136 = arith.subf %123, %135 : vector<16x32xf32>
    %cst_49 = arith.constant 9.99999974E-6 : f32
    %137 = vector.broadcast %cst_49 : f32 to vector<16x1xf32>
    %138 = arith.addf %134, %137 : vector<16x1xf32>
    %139 = math.rsqrt %138 : vector<16x1xf32>
    %140 = vector.broadcast %139 : vector<16x1xf32> to vector<16x32xf32>
    %141 = arith.mulf %136, %140 : vector<16x32xf32>
    %c0_50 = arith.constant 0 : index
    %c0_51 = arith.constant 0 : index
    %c0_52 = arith.constant 0 : index
    %142 = vector.load %arg7[%c0_50, %c0_51, %c0_52] : memref<1x1x32xf32, #tpu.memory_space<vmem>>, vector<1x1x32xf32>
    %143 = vector.shape_cast %142 : vector<1x1x32xf32> to vector<1x32xf32>
    %144 = vector.broadcast %143 : vector<1x32xf32> to vector<16x32xf32>
    %145 = arith.mulf %141, %144 : vector<16x32xf32>
    %c0_53 = arith.constant 0 : index
    %c0_54 = arith.constant 0 : index
    %c0_55 = arith.constant 0 : index
    %146 = vector.load %arg8[%c0_53, %c0_54, %c0_55] : memref<1x1x32xf32, #tpu.memory_space<vmem>>, vector<1x1x32xf32>
    %147 = vector.shape_cast %146 : vector<1x1x32xf32> to vector<1x32xf32>
    %148 = vector.broadcast %147 : vector<1x32xf32> to vector<16x32xf32>
    %149 = arith.addf %145, %148 : vector<16x32xf32>
    %150 = arith.truncf %149 : vector<16x32xf32> to vector<16x32xbf16>
    %c0_56 = arith.constant 0 : index
    %c0_57 = arith.constant 0 : index
    %c0_58 = arith.constant 0 : index
    %151 = vector.load %arg9[%c0_56, %c0_57, %c0_58] : memref<1x32x64xbf16, #tpu.memory_space<vmem>>, vector<1x32x64xbf16>
    %152 = vector.shape_cast %151 : vector<1x32x64xbf16> to vector<32x64xbf16>
    %cst_59 = arith.constant dense<0.000000e+00> : vector<16x64xf32>
    %153 = tpu.matmul %150, %152, %cst_59 {dimension_numbers = #tpu.dot_dimension_numbers<[1], [0], [0], [1], [0, 0, 1, 1], [], []>} : vector<16x32xbf16>, vector<32x64xbf16>, vector<16x64xf32> -> vector<16x64xf32>
    %c0_60 = arith.constant 0 : index
    %c0_61 = arith.constant 0 : index
    %c0_62 = arith.constant 0 : index
    %154 = vector.load %arg10[%c0_60, %c0_61, %c0_62] : memref<1x1x64xf32, #tpu.memory_space<vmem>>, vector<1x1x64xf32>
    %155 = vector.shape_cast %154 : vector<1x1x64xf32> to vector<1x64xf32>
    %156 = vector.broadcast %155 : vector<1x64xf32> to vector<16x64xf32>
    %157 = arith.addf %153, %156 : vector<16x64xf32>
    %cst_63 = arith.constant 0.000000e+00 : f32
    %158 = vector.broadcast %cst_63 : f32 to vector<16x64xf32>
    %159 = arith.maximumf %157, %158 : vector<16x64xf32>
    %160 = arith.truncf %159 : vector<16x64xf32> to vector<16x64xbf16>
    %c0_64 = arith.constant 0 : index
    %c0_65 = arith.constant 0 : index
    %c0_66 = arith.constant 0 : index
    %161 = vector.load %arg11[%c0_64, %c0_65, %c0_66] : memref<1x64x32xbf16, #tpu.memory_space<vmem>>, vector<1x64x32xbf16>
    %162 = vector.shape_cast %161 : vector<1x64x32xbf16> to vector<64x32xbf16>
    %cst_67 = arith.constant dense<0.000000e+00> : vector<16x32xf32>
    %163 = tpu.matmul %160, %162, %cst_67 {dimension_numbers = #tpu.dot_dimension_numbers<[1], [0], [0], [1], [0, 0, 1, 1], [], []>} : vector<16x64xbf16>, vector<64x32xbf16>, vector<16x32xf32> -> vector<16x32xf32>
    %c0_68 = arith.constant 0 : index
    %c0_69 = arith.constant 0 : index
    %c0_70 = arith.constant 0 : index
    %164 = vector.load %arg12[%c0_68, %c0_69, %c0_70] : memref<1x1x32xf32, #tpu.memory_space<vmem>>, vector<1x1x32xf32>
    %165 = vector.shape_cast %164 : vector<1x1x32xf32> to vector<1x32xf32>
    %166 = vector.broadcast %165 : vector<1x32xf32> to vector<16x32xf32>
    %167 = arith.addf %163, %166 : vector<16x32xf32>
    %168 = arith.addf %167, %149 : vector<16x32xf32>
    %cst_71 = arith.constant dense<0.000000e+00> : vector<16xf32>
    %169 = vector.multi_reduction <add>, %168, %cst_71 [1] : vector<16x32xf32> to vector<16xf32>
    %170 = vector.shape_cast %169 : vector<16xf32> to vector<16x1xf32>
    %cst_72 = arith.constant 3.200000e+01 : f32
    %171 = vector.broadcast %cst_72 : f32 to vector<16x1xf32>
    %172 = arith.divf %170, %171 : vector<16x1xf32>
    %173 = vector.broadcast %172 : vector<16x1xf32> to vector<16x32xf32>
    %174 = arith.subf %168, %173 : vector<16x32xf32>
    %175 = arith.mulf %174, %174 : vector<16x32xf32>
    %cst_73 = arith.constant dense<0.000000e+00> : vector<16xf32>
    %176 = vector.multi_reduction <add>, %175, %cst_73 [1] : vector<16x32xf32> to vector<16xf32>
    %177 = vector.shape_cast %176 : vector<16xf32> to vector<16x1xf32>
    %cst_74 = arith.constant 3.200000e+01 : f32
    %178 = vector.broadcast %cst_74 : f32 to vector<16x1xf32>
    %179 = arith.divf %177, %178 : vector<16x1xf32>
    %180 = vector.broadcast %172 : vector<16x1xf32> to vector<16x32xf32>
    %181 = arith.subf %168, %180 : vector<16x32xf32>
    %cst_75 = arith.constant 9.99999974E-6 : f32
    %182 = vector.broadcast %cst_75 : f32 to vector<16x1xf32>
    %183 = arith.addf %179, %182 : vector<16x1xf32>
    %184 = math.rsqrt %183 : vector<16x1xf32>
    %185 = vector.broadcast %184 : vector<16x1xf32> to vector<16x32xf32>
    %186 = arith.mulf %181, %185 : vector<16x32xf32>
    %c0_76 = arith.constant 0 : index
    %c0_77 = arith.constant 0 : index
    %c0_78 = arith.constant 0 : index
    %187 = vector.load %arg13[%c0_76, %c0_77, %c0_78] : memref<1x1x32xf32, #tpu.memory_space<vmem>>, vector<1x1x32xf32>
    %188 = vector.shape_cast %187 : vector<1x1x32xf32> to vector<1x32xf32>
    %189 = vector.broadcast %188 : vector<1x32xf32> to vector<16x32xf32>
    %190 = arith.mulf %186, %189 : vector<16x32xf32>
    %c0_79 = arith.constant 0 : index
    %c0_80 = arith.constant 0 : index
    %c0_81 = arith.constant 0 : index
    %191 = vector.load %arg14[%c0_79, %c0_80, %c0_81] : memref<1x1x32xf32, #tpu.memory_space<vmem>>, vector<1x1x32xf32>
    %192 = vector.shape_cast %191 : vector<1x1x32xf32> to vector<1x32xf32>
    %193 = vector.broadcast %192 : vector<1x32xf32> to vector<16x32xf32>
    %194 = arith.addf %190, %193 : vector<16x32xf32>
    %c0_82 = arith.constant 0 : index
    %c0_83 = arith.constant 0 : index
    %195 = vector.load %arg16[%c0_82, %c0_83] : memref<16x32xf32, #tpu.memory_space<vmem>>, vector<16x32xf32>
    tpu.vector_store %arg16[%c0_82, %c0_83], %194 {strides = array<i32>} : memref<16x32xf32, #tpu.memory_space<vmem>>, vector<16x32xf32>,
    %c1_i32 = arith.constant 1 : i32
    %196 = arith.cmpi eq, %arg1, %c1_i32 : i32
    %197 = arith.extui %196 : i1 to i32
    %c0_i32_84 = arith.constant 0 : i32
    %198 = arith.cmpi ne, %197, %c0_i32_84 : i32
    scf.if %198 {
      %199 = vector.shape_cast %194 : vector<16x32xf32> to vector<2x8x32xf32>
      %c0_85 = arith.constant 0 : index
      %c0_86 = arith.constant 0 : index
      %c0_87 = arith.constant 0 : index
      %200 = vector.load %arg15[%c0_85, %c0_86, %c0_87] : memref<2x8x32xf32, #tpu.memory_space<vmem>>, vector<2x8x32xf32>
      tpu.vector_store %arg15[%c0_85, %c0_86, %c0_87], %199 {strides = array<i32>} : memref<2x8x32xf32, #tpu.memory_space<vmem>>, vector<2x8x32xf32>,
    } else {
    }
    return
  }
  func.func @transform_0(%arg0: i32, %arg1: i32) -> (i32, i32, i32) {
    %c0_i32 = arith.constant 0 : i32
    %c0_i32_0 = arith.constant 0 : i32
    %c0_i32_1 = arith.constant 0 : i32
    return %arg0, %c0_i32, %c0_i32_0 : i32, i32, i32
  }
  func.func @transform_1(%arg0: i32, %arg1: i32) -> (i32, i32, i32) {
    %c0_i32 = arith.constant 0 : i32
    %c0_i32_0 = arith.constant 0 : i32
    %c0_i32_1 = arith.constant 0 : i32
    return %arg1, %c0_i32, %c0_i32_0 : i32, i32, i32
  }
  func.func @transform_2(%arg0: i32, %arg1: i32) -> (i32, i32, i32) {
    %c0_i32 = arith.constant 0 : i32
    %c0_i32_0 = arith.constant 0 : i32
    %c0_i32_1 = arith.constant 0 : i32
    return %arg1, %c0_i32, %c0_i32_0 : i32, i32, i32
  }
  func.func @transform_3(%arg0: i32, %arg1: i32) -> (i32, i32, i32, i32) {
    %c0_i32 = arith.constant 0 : i32
    %c0_i32_0 = arith.constant 0 : i32
    %c0_i32_1 = arith.constant 0 : i32
    %c0_i32_2 = arith.constant 0 : i32
    return %arg1, %c0_i32, %c0_i32_0, %c0_i32_1 : i32, i32, i32, i32
  }
  func.func @transform_4(%arg0: i32, %arg1: i32) -> (i32, i32, i32) {
    %c0_i32 = arith.constant 0 : i32
    %c0_i32_0 = arith.constant 0 : i32
    %c0_i32_1 = arith.constant 0 : i32
    return %arg1, %c0_i32, %c0_i32_0 : i32, i32, i32
  }
  func.func @transform_5(%arg0: i32, %arg1: i32) -> (i32, i32, i32) {
    %c0_i32 = arith.constant 0 : i32
    %c0_i32_0 = arith.constant 0 : i32
    %c0_i32_1 = arith.constant 0 : i32
    return %arg1, %c0_i32, %c0_i32_0 : i32, i32, i32
  }
  func.func @transform_6(%arg0: i32, %arg1: i32) -> (i32, i32, i32) {
    %c0_i32 = arith.constant 0 : i32
    %c0_i32_0 = arith.constant 0 : i32
    %c0_i32_1 = arith.constant 0 : i32
    return %arg1, %c0_i32, %c0_i32_0 : i32, i32, i32
  }
  func.func @transform_7(%arg0: i32, %arg1: i32) -> (i32, i32, i32) {
    %c0_i32 = arith.constant 0 : i32
    %c0_i32_0 = arith.constant 0 : i32
    %c0_i32_1 = arith.constant 0 : i32
    return %arg1, %c0_i32, %c0_i32_0 : i32, i32, i32
  }
  func.func @transform_8(%arg0: i32, %arg1: i32) -> (i32, i32, i32) {
    %c0_i32 = arith.constant 0 : i32
    %c0_i32_0 = arith.constant 0 : i32
    %c0_i32_1 = arith.constant 0 : i32
    return %arg1, %c0_i32, %c0_i32_0 : i32, i32, i32
  }
  func.func @transform_9(%arg0: i32, %arg1: i32) -> (i32, i32, i32) {
    %c0_i32 = arith.constant 0 : i32
    %c0_i32_0 = arith.constant 0 : i32
    %c0_i32_1 = arith.constant 0 : i32
    return %arg1, %c0_i32, %c0_i32_0 : i32, i32, i32
  }
  func.func @transform_10(%arg0: i32, %arg1: i32) -> (i32, i32, i32) {
    %c0_i32 = arith.constant 0 : i32
    %c0_i32_0 = arith.constant 0 : i32
    %c0_i32_1 = arith.constant 0 : i32
    return %arg1, %c0_i32, %c0_i32_0 : i32, i32, i32
  }
  func.func @transform_11(%arg0: i32, %arg1: i32) -> (i32, i32, i32) {
    %c0_i32 = arith.constant 0 : i32
    %c0_i32_0 = arith.constant 0 : i32
    %c0_i32_1 = arith.constant 0 : i32
    return %arg1, %c0_i32, %c0_i32_0 : i32, i32, i32
  }
  func.func @transform_12(%arg0: i32, %arg1: i32) -> (i32, i32, i32) {
    %c0_i32 = arith.constant 0 : i32
    %c0_i32_0 = arith.constant 0 : i32
    %c0_i32_1 = arith.constant 0 : i32
    return %arg1, %c0_i32, %c0_i32_0 : i32, i32, i32
  }
  func.func @transform_13(%arg0: i32, %arg1: i32) -> (i32, i32, i32) {
    %c0_i32 = arith.constant 0 : i32
    %c0_i32_0 = arith.constant 0 : i32
    %c0_i32_1 = arith.constant 0 : i32
    return %arg0, %c0_i32, %c0_i32_0 : i32, i32, i32
  }
}

</mosaic_0001>

<llo_original>
// kernel: tpu_custom_call.1
$region0: #{tpu_custom_call.1}
  #allocation0 [shape = 'u32[]', space=smem, size = 0x4, offset = 0x4, fixed_abs, tag = 'smem constant byte address 0x4 - core index']
  #allocation1 [shape = 'u32[144,128]{1,0:T(1,128)}', space=vmem, size = 0x12000, scoped, tag = 'internal scratch']
  #allocation2 [shape = 'f32[16,32]{1,0:T(8,128)}', space=vmem, size = 0x2000, scoped, tag = 'scratch operand']
  %s0 = inlined_call_operand.hbm [shape: f32[2,8,32], index: 0, kind: input, shape index: {}]
  %s1 = inlined_call_operand.vmem [shape: bf16[2,32,96], index: 1, kind: input, shape index: {}]
  %s2 = inlined_call_operand.vmem [shape: f32[2,1,96], index: 2, kind: input, shape index: {}]
  %s3 = inlined_call_operand.vmem [shape: bf16[2,4,8,32], index: 3, kind: input, shape index: {}]
  %s4 = inlined_call_operand.vmem [shape: f32[2,1,32], index: 4, kind: input, shape index: {}]
  %s5 = inlined_call_operand.vmem [shape: f32[2,1,32], index: 5, kind: input, shape index: {}]
  %s6 = inlined_call_operand.vmem [shape: f32[2,1,32], index: 6, kind: input, shape index: {}]
  %s7 = inlined_call_operand.vmem [shape: bf16[2,32,64], index: 7, kind: input, shape index: {}]
  %s8 = inlined_call_operand.vmem [shape: f32[2,1,64], index: 8, kind: input, shape index: {}]
  %s9 = inlined_call_operand.vmem [shape: bf16[2,64,32], index: 9, kind: input, shape index: {}]
  %s10 = inlined_call_operand.vmem [shape: f32[2,1,32], index: 10, kind: input, shape index: {}]
  %s11 = inlined_call_operand.vmem [shape: f32[2,1,32], index: 11, kind: input, shape index: {}]
  %s12 = inlined_call_operand.vmem [shape: f32[2,1,32], index: 12, kind: input, shape index: {}]
  %s13 = inlined_call_operand.hbm [shape: f32[2,8,32], index: 13, kind: output, shape index: {}]
  %s14 = sld [smem:[#allocation0]]
  $region97: #{tpu_custom_call.1} parent=0
    _
  %s16 = ssub.s32 1, %s14
  %s17 = scalar_select 0, %s16, %s14
  $region1: #{tpu_custom_call.1} parent=0
    #allocation3 [shape = 'u8[8192]{0}', space=vmem, size = 0x2000, scoped, tag = 'input window, operand 0, single buffered']
    #allocation4 [shape = 's32[2]{0}', space=sflag, size = 0x8, scoped, tag = 'scoped memory for tpu_custom_call.1']
    #allocation5 [shape = 's32[2]{0}', space=sflag, size = 0x8, scoped, tag = 'scoped memory for tpu_custom_call.1']
    #allocation6 [shape = 'u8[8192]{0}', space=vmem, size = 0x2000, scoped, tag = 'output window, operand 0, single buffered']
    %18 = vsyncpa [#allocation4], 0
    %19 = vsyncpa [#allocation5], 0
    loop: start=0, step=1, limit=4
    $region2: #{tpu_custom_call.1} parent=1 // loop_pre_header
      _
    $region3: #{tpu_custom_call.1} parent=1 // loop_header
      %s21 = sphi 0, %s25
      %p22 = scmp.ge.s32.totalorder %s21, 4
      %s28 = sphi 0, %s40
      %s29 = sphi 0, %s36
      %s30 = sphi 0, %s28
      %s31 = sphi 0, %s29
      %s32 = sphi 0, %s30
      %s33 = sphi 0, %s31
      %s43 = sphi 0, %s45
      %s46 = sphi 0, %s43
      %s47 = sphi 0, %s46
      %s63 = sphi 0, %s47
      %s69 = sphi 0, %s71
      %s72 = sphi 0, %s69
      %s73 = sphi 0, %s72
      %s89 = sphi 0, %s73
      %s95 = sphi 0, %s97
      %s98 = sphi 0, %s95
      %s99 = sphi 0, %s98
      %s115 = sphi 0, %s99
      %s121 = sphi 0, %s123
      %s124 = sphi 0, %s121
      %s125 = sphi 0, %s124
      %s141 = sphi 0, %s125
      %s147 = sphi 0, %s149
      %s150 = sphi 0, %s147
      %s151 = sphi 0, %s150
      %s167 = sphi 0, %s151
      %s173 = sphi 0, %s175
      %s176 = sphi 0, %s173
      %s177 = sphi 0, %s176
      %s193 = sphi 0, %s177
      %s199 = sphi 0, %s201
      %s202 = sphi 0, %s199
      %s203 = sphi 0, %s202
      %s219 = sphi 0, %s203
      %s225 = sphi 0, %s227
      %s228 = sphi 0, %s225
      %s229 = sphi 0, %s228
      %s245 = sphi 0, %s229
      %s251 = sphi 0, %s253
      %s254 = sphi 0, %s251
      %s255 = sphi 0, %s254
      %s271 = sphi 0, %s255
      %s277 = sphi 0, %s279
      %s280 = sphi 0, %s277
      %s281 = sphi 0, %s280
      %s297 = sphi 0, %s281
      %s303 = sphi 0, %s305
      %s306 = sphi 0, %s303
      %s307 = sphi 0, %s306
      %s323 = sphi 0, %s307
      %s329 = sphi 0, %s331
      %s332 = sphi 0, %s329
      %s333 = sphi 0, %s332
      %s349 = sphi 0, %s333
      %s355 = sphi 0, %s357
      %s358 = sphi 0, %s355
      %s359 = sphi 0, %s358
      %s375 = sphi 0, %s359
      %s381 = sphi 0, %s383
      %s384 = sphi 0, %s381
      %s385 = sphi 0, %s384
      %s401 = sphi 0, %s385
    $region4: #{tpu_custom_call.1} parent=1 // loop_header_branch
      %24 = sbr.rel (%p22) target = $region8
    $region5: #{tpu_custom_call.1} parent=1 // loop_body
      %s26 = ssub.s32 %s21, 1
      %s27 = ssub.s32 %s21, 2
      %s34 = sadd.s32 1, %s29
      %p35 = scmp.ge.s32.totalorder %s34, 2
      %s36 = scalar_select %p35, 0, %s34
      %s37 = sadd.s32 1, %s28
      %s38 = scalar_select %p35, %s37, %s28
      %p39 = scmp.ge.s32.totalorder %s38, 1
      %s40 = scalar_select %p39, 0, %s38
      %s41 = ssub.s32 %s28, %s40
      %p42 = scmp.eq.s32.totalorder %s41, 0
      %s44 = sadd.s32 %s43, 1
      %s45 = scalar_select %p42, %s43, %s44
      %p48 = pneg %p42
      %p49 = scmp.eq.s32.totalorder %s21, 1
      %p50 = por %p48, %p49
      %p51 = scmp.ne.s32.totalorder %s43, %s46
      %p52 = scmp.eq.s32.totalorder %s21, 0
      %p53 = por %p51, %p52
      %p54 = scmp.ne.s32.totalorder %s43, %s46
      %p55 = scmp.eq.s32.totalorder %s26, 1
      %p56 = por %p54, %p55
      %p57 = scmp.ne.s32.totalorder %s46, %s47
      %p58 = scmp.eq.s32.totalorder %s26, 0
      %p59 = por %p57, %p58
      %p60 = scmp.ne.s32.totalorder %s46, %s47
      %p61 = scmp.eq.s32.totalorder %s27, 1
      %p62 = por %p60, %p61
      %p64 = scmp.ne.s32.totalorder %s47, %s63
      %p65 = scmp.eq.s32.totalorder %s27, 0
      %p66 = por %p64, %p65
      %s67 = ssub.s32 %s29, %s36
      %p68 = scmp.eq.s32.totalorder %s67, 0
      %s70 = sadd.s32 %s69, 1
      %s71 = scalar_select %p68, %s69, %s70
      %p74 = pneg %p68
      %p75 = scmp.eq.s32.totalorder %s21, 1
      %p76 = por %p74, %p75
      %p77 = scmp.ne.s32.totalorder %s69, %s72
      %p78 = scmp.eq.s32.totalorder %s21, 0
      %p79 = por %p77, %p78
      %p80 = scmp.ne.s32.totalorder %s69, %s72
      %p81 = scmp.eq.s32.totalorder %s26, 1
      %p82 = por %p80, %p81
      %p83 = scmp.ne.s32.totalorder %s72, %s73
      %p84 = scmp.eq.s32.totalorder %s26, 0
      %p85 = por %p83, %p84
      %p86 = scmp.ne.s32.totalorder %s72, %s73
      %p87 = scmp.eq.s32.totalorder %s27, 1
      %p88 = por %p86, %p87
      %p90 = scmp.ne.s32.totalorder %s73, %s89
      %p91 = scmp.eq.s32.totalorder %s27, 0
      %p92 = por %p90, %p91
      %s93 = ssub.s32 %s29, %s36
      %p94 = scmp.eq.s32.totalorder %s93, 0
      %s96 = sadd.s32 %s95, 1
      %s97 = scalar_select %p94, %s95, %s96
      %p100 = pneg %p94
      %p101 = scmp.eq.s32.totalorder %s21, 1
      %p102 = por %p100, %p101
      %p103 = scmp.ne.s32.totalorder %s95, %s98
      %p104 = scmp.eq.s32.totalorder %s21, 0
      %p105 = por %p103, %p104
      %p106 = scmp.ne.s32.totalorder %s95, %s98
      %p107 = scmp.eq.s32.totalorder %s26, 1
      %p108 = por %p106, %p107
      %p109 = scmp.ne.s32.totalorder %s98, %s99
      %p110 = scmp.eq.s32.totalorder %s26, 0
      %p111 = por %p109, %p110
      %p112 = scmp.ne.s32.totalorder %s98, %s99
      %p113 = scmp.eq.s32.totalorder %s27, 1
      %p114 = por %p112, %p113
      %p116 = scmp.ne.s32.totalorder %s99, %s115
      %p117 = scmp.eq.s32.totalorder %s27, 0
      %p118 = por %p116, %p117
      %s119 = ssub.s32 %s29, %s36
      %p120 = scmp.eq.s32.totalorder %s119, 0
      %s122 = sadd.s32 %s121, 1
      %s123 = scalar_select %p120, %s121, %s122
      %p126 = pneg %p120
      %p127 = scmp.eq.s32.totalorder %s21, 1
      %p128 = por %p126, %p127
      %p129 = scmp.ne.s32.totalorder %s121, %s124
      %p130 = scmp.eq.s32.totalorder %s21, 0
      %p131 = por %p129, %p130
      %p132 = scmp.ne.s32.totalorder %s121, %s124
      %p133 = scmp.eq.s32.totalorder %s26, 1
      %p134 = por %p132, %p133
      %p135 = scmp.ne.s32.totalorder %s124, %s125
      %p136 = scmp.eq.s32.totalorder %s26, 0
      %p137 = por %p135, %p136
      %p138 = scmp.ne.s32.totalorder %s124, %s125
      %p139 = scmp.eq.s32.totalorder %s27, 1
      %p140 = por %p138, %p139
      %p142 = scmp.ne.s32.totalorder %s125, %s141
      %p143 = scmp.eq.s32.totalorder %s27, 0
      %p144 = por %p142, %p143
      %s145 = ssub.s32 %s29, %s36
      %p146 = scmp.eq.s32.totalorder %s145, 0
      %s148 = sadd.s32 %s147, 1
      %s149 = scalar_select %p146, %s147, %s148
      %p152 = pneg %p146
      %p153 = scmp.eq.s32.totalorder %s21, 1
      %p154 = por %p152, %p153
      %p155 = scmp.ne.s32.totalorder %s147, %s150
      %p156 = scmp.eq.s32.totalorder %s21, 0
      %p157 = por %p155, %p156
      %p158 = scmp.ne.s32.totalorder %s147, %s150
      %p159 = scmp.eq.s32.totalorder %s26, 1
      %p160 = por %p158, %p159
      %p161 = scmp.ne.s32.totalorder %s150, %s151
      %p162 = scmp.eq.s32.totalorder %s26, 0
      %p163 = por %p161, %p162
      %p164 = scmp.ne.s32.totalorder %s150, %s151
      %p165 = scmp.eq.s32.totalorder %s27, 1
      %p166 = por %p164, %p165
      %p168 = scmp.ne.s32.totalorder %s151, %s167
      %p169 = scmp.eq.s32.totalorder %s27, 0
      %p170 = por %p168, %p169
      %s171 = ssub.s32 %s29, %s36
      %p172 = scmp.eq.s32.totalorder %s171, 0
      %s174 = sadd.s32 %s173, 1
      %s175 = scalar_select %p172, %s173, %s174
      %p178 = pneg %p172
      %p179 = scmp.eq.s32.totalorder %s21, 1
      %p180 = por %p178, %p179
      %p181 = scmp.ne.s32.totalorder %s173, %s176
      %p182 = scmp.eq.s32.totalorder %s21, 0
      %p183 = por %p181, %p182
      %p184 = scmp.ne.s32.totalorder %s173, %s176
      %p185 = scmp.eq.s32.totalorder %s26, 1
      %p186 = por %p184, %p185
      %p187 = scmp.ne.s32.totalorder %s176, %s177
      %p188 = scmp.eq.s32.totalorder %s26, 0
      %p189 = por %p187, %p188
      %p190 = scmp.ne.s32.totalorder %s176, %s177
      %p191 = scmp.eq.s32.totalorder %s27, 1
      %p192 = por %p190, %p191
      %p194 = scmp.ne.s32.totalorder %s177, %s193
      %p195 = scmp.eq.s32.totalorder %s27, 0
      %p196 = por %p194, %p195
      %s197 = ssub.s32 %s29, %s36
      %p198 = scmp.eq.s32.totalorder %s197, 0
      %s200 = sadd.s32 %s199, 1
      %s201 = scalar_select %p198, %s199, %s200
      %p204 = pneg %p198
      %p205 = scmp.eq.s32.totalorder %s21, 1
      %p206 = por %p204, %p205
      %p207 = scmp.ne.s32.totalorder %s199, %s202
      %p208 = scmp.eq.s32.totalorder %s21, 0
      %p209 = por %p207, %p208
      %p210 = scmp.ne.s32.totalorder %s199, %s202
      %p211 = scmp.eq.s32.totalorder %s26, 1
      %p212 = por %p210, %p211
      %p213 = scmp.ne.s32.totalorder %s202, %s203
      %p214 = scmp.eq.s32.totalorder %s26, 0
      %p215 = por %p213, %p214
      %p216 = scmp.ne.s32.totalorder %s202, %s203
      %p217 = scmp.eq.s32.totalorder %s27, 1
      %p218 = por %p216, %p217
      %p220 = scmp.ne.s32.totalorder %s203, %s219
      %p221 = scmp.eq.s32.totalorder %s27, 0
      %p222 = por %p220, %p221
      %s223 = ssub.s32 %s29, %s36
      %p224 = scmp.eq.s32.totalorder %s223, 0
      %s226 = sadd.s32 %s225, 1
      %s227 = scalar_select %p224, %s225, %s226
      %p230 = pneg %p224
      %p231 = scmp.eq.s32.totalorder %s21, 1
      %p232 = por %p230, %p231
      %p233 = scmp.ne.s32.totalorder %s225, %s228
      %p234 = scmp.eq.s32.totalorder %s21, 0
      %p235 = por %p233, %p234
      %p236 = scmp.ne.s32.totalorder %s225, %s228
      %p237 = scmp.eq.s32.totalorder %s26, 1
      %p238 = por %p236, %p237
      %p239 = scmp.ne.s32.totalorder %s228, %s229
      %p240 = scmp.eq.s32.totalorder %s26, 0
      %p241 = por %p239, %p240
      %p242 = scmp.ne.s32.totalorder %s228, %s229
      %p243 = scmp.eq.s32.totalorder %s27, 1
      %p244 = por %p242, %p243
      %p246 = scmp.ne.s32.totalorder %s229, %s245
      %p247 = scmp.eq.s32.totalorder %s27, 0
      %p248 = por %p246, %p247
      %s249 = ssub.s32 %s29, %s36
      %p250 = scmp.eq.s32.totalorder %s249, 0
      %s252 = sadd.s32 %s251, 1
      %s253 = scalar_select %p250, %s251, %s252
      %p256 = pneg %p250
      %p257 = scmp.eq.s32.totalorder %s21, 1
      %p258 = por %p256, %p257
      %p259 = scmp.ne.s32.totalorder %s251, %s254
      %p260 = scmp.eq.s32.totalorder %s21, 0
      %p261 = por %p259, %p260
      %p262 = scmp.ne.s32.totalorder %s251, %s254
      %p263 = scmp.eq.s32.totalorder %s26, 1
      %p264 = por %p262, %p263
      %p265 = scmp.ne.s32.totalorder %s254, %s255
      %p266 = scmp.eq.s32.totalorder %s26, 0
      %p267 = por %p265, %p266
      %p268 = scmp.ne.s32.totalorder %s254, %s255
      %p269 = scmp.eq.s32.totalorder %s27, 1
      %p270 = por %p268, %p269
      %p272 = scmp.ne.s32.totalorder %s255, %s271
      %p273 = scmp.eq.s32.totalorder %s27, 0
      %p274 = por %p272, %p273
      %s275 = ssub.s32 %s29, %s36
      %p276 = scmp.eq.s32.totalorder %s275, 0
      %s278 = sadd.s32 %s277, 1
      %s279 = scalar_select %p276, %s277, %s278
      %p282 = pneg %p276
      %p283 = scmp.eq.s32.totalorder %s21, 1
      %p284 = por %p282, %p283
      %p285 = scmp.ne.s32.totalorder %s277, %s280
      %p286 = scmp.eq.s32.totalorder %s21, 0
      %p287 = por %p285, %p286
      %p288 = scmp.ne.s32.totalorder %s277, %s280
      %p289 = scmp.eq.s32.totalorder %s26, 1
      %p290 = por %p288, %p289
      %p291 = scmp.ne.s32.totalorder %s280, %s281
      %p292 = scmp.eq.s32.totalorder %s26, 0
      %p293 = por %p291, %p292
      %p294 = scmp.ne.s32.totalorder %s280, %s281
      %p295 = scmp.eq.s32.totalorder %s27, 1
      %p296 = por %p294, %p295
      %p298 = scmp.ne.s32.totalorder %s281, %s297
      %p299 = scmp.eq.s32.totalorder %s27, 0
      %p300 = por %p298, %p299
      %s301 = ssub.s32 %s29, %s36
      %p302 = scmp.eq.s32.totalorder %s301, 0
      %s304 = sadd.s32 %s303, 1
      %s305 = scalar_select %p302, %s303, %s304
      %p308 = pneg %p302
      %p309 = scmp.eq.s32.totalorder %s21, 1
      %p310 = por %p308, %p309
      %p311 = scmp.ne.s32.totalorder %s303, %s306
      %p312 = scmp.eq.s32.totalorder %s21, 0
      %p313 = por %p311, %p312
      %p314 = scmp.ne.s32.totalorder %s303, %s306
      %p315 = scmp.eq.s32.totalorder %s26, 1
      %p316 = por %p314, %p315
      %p317 = scmp.ne.s32.totalorder %s306, %s307
      %p318 = scmp.eq.s32.totalorder %s26, 0
      %p319 = por %p317, %p318
      %p320 = scmp.ne.s32.totalorder %s306, %s307
      %p321 = scmp.eq.s32.totalorder %s27, 1
      %p322 = por %p320, %p321
      %p324 = scmp.ne.s32.totalorder %s307, %s323
      %p325 = scmp.eq.s32.totalorder %s27, 0
      %p326 = por %p324, %p325
      %s327 = ssub.s32 %s29, %s36
      %p328 = scmp.eq.s32.totalorder %s327, 0
      %s330 = sadd.s32 %s329, 1
      %s331 = scalar_select %p328, %s329, %s330
      %p334 = pneg %p328
      %p335 = scmp.eq.s32.totalorder %s21, 1
      %p336 = por %p334, %p335
      %p337 = scmp.ne.s32.totalorder %s329, %s332
      %p338 = scmp.eq.s32.totalorder %s21, 0
      %p339 = por %p337, %p338
      %p340 = scmp.ne.s32.totalorder %s329, %s332
      %p341 = scmp.eq.s32.totalorder %s26, 1
      %p342 = por %p340, %p341
      %p343 = scmp.ne.s32.totalorder %s332, %s333
      %p344 = scmp.eq.s32.totalorder %s26, 0
      %p345 = por %p343, %p344
      %p346 = scmp.ne.s32.totalorder %s332, %s333
      %p347 = scmp.eq.s32.totalorder %s27, 1
      %p348 = por %p346, %p347
      %p350 = scmp.ne.s32.totalorder %s333, %s349
      %p351 = scmp.eq.s32.totalorder %s27, 0
      %p352 = por %p350, %p351
      %s353 = ssub.s32 %s29, %s36
      %p354 = scmp.eq.s32.totalorder %s353, 0
      %s356 = sadd.s32 %s355, 1
      %s357 = scalar_select %p354, %s355, %s356
      %p360 = pneg %p354
      %p361 = scmp.eq.s32.totalorder %s21, 1
      %p362 = por %p360, %p361
      %p363 = scmp.ne.s32.totalorder %s355, %s358
      %p364 = scmp.eq.s32.totalorder %s21, 0
      %p365 = por %p363, %p364
      %p366 = scmp.ne.s32.totalorder %s355, %s358
      %p367 = scmp.eq.s32.totalorder %s26, 1
      %p368 = por %p366, %p367
      %p369 = scmp.ne.s32.totalorder %s358, %s359
      %p370 = scmp.eq.s32.totalorder %s26, 0
      %p371 = por %p369, %p370
      %p372 = scmp.ne.s32.totalorder %s358, %s359
      %p373 = scmp.eq.s32.totalorder %s27, 1
      %p374 = por %p372, %p373
      %p376 = scmp.ne.s32.totalorder %s359, %s375
      %p377 = scmp.eq.s32.totalorder %s27, 0
      %p378 = por %p376, %p377
      %s379 = ssub.s32 %s28, %s40
      %p380 = scmp.eq.s32.totalorder %s379, 0
      %s382 = sadd.s32 %s381, 1
      %s383 = scalar_select %p380, %s381, %s382
      %p386 = pneg %p380
      %p387 = scmp.eq.s32.totalorder %s21, 1
      %p388 = por %p386, %p387
      %p389 = scmp.ne.s32.totalorder %s381, %s384
      %p390 = scmp.eq.s32.totalorder %s21, 0
      %p391 = por %p389, %p390
      %p392 = scmp.ne.s32.totalorder %s381, %s384
      %p393 = scmp.eq.s32.totalorder %s26, 1
      %p394 = por %p392, %p393
      %p395 = scmp.ne.s32.totalorder %s384, %s385
      %p396 = scmp.eq.s32.totalorder %s26, 0
      %p397 = por %p395, %p396
      %p398 = scmp.ne.s32.totalorder %s384, %s385
      %p399 = scmp.eq.s32.totalorder %s27, 1
      %p400 = por %p398, %p399
      %p402 = scmp.ne.s32.totalorder %s385, %s401
      %p403 = scmp.eq.s32.totalorder %s27, 0
      %p404 = por %p402, %p403
      %p405 = scmp.le.s32.totalorder 1, %s21
      %p406 = scmp.lt.s32.totalorder %s21, 3
      %p407 = pnand %p405, %p406
      %p408 = pneg %p407
      // Predicated region
      $region9: #{tpu_custom_call.1} parent=5 // pred_check
        _
      $region10: #{tpu_custom_call.1} parent=5 // pred_check_branch
        %410 = sbr.rel (%p407) target = $region12
      $region11: #{tpu_custom_call.1} parent=5 // pred_region
        %s411 = ssub.s32 %s21, 1
        // Predicated region
        $region13: #{tpu_custom_call.1} parent=11 // pred_check
          %p412 = pneg %p59
        $region14: #{tpu_custom_call.1} parent=11 // pred_check_branch
          %414 = sbr.rel (%p412) target = $region16
        $region15: #{tpu_custom_call.1} parent=11 // pred_region
          %s415 = smul.u32 2, %s30
          %s417 = ssub.s32 256, 256
          %418 = vsyncadd [#allocation4], %s417
          %s419 = smul.addr %s415, 128
          %s420 = scalar_lea.hbm %s0, %s419
          %s421 = sshll.u32 [#allocation3], 4
          %s422 = int_to_ptr.vmem [resolvable:$true] %s421
          %427 = dma.hbm_to_vmem [thread:$0]  %s420, 256, %s422, [#allocation4], 128, 128, 8
        $region16: #{tpu_custom_call.1} parent=11 // pred_fallthru
          _
      $region12: #{tpu_custom_call.1} parent=5 // pred_fallthru
        _
      %p428 = scmp.lt.s32.totalorder %s21, 2
      // Predicated region
      $region17: #{tpu_custom_call.1} parent=5 // pred_check
        %p429 = pneg %p428
      $region18: #{tpu_custom_call.1} parent=5 // pred_check_branch
        %431 = sbr.rel (%p429) target = $region20
      $region19: #{tpu_custom_call.1} parent=5 // pred_region
        // Predicated region
        $region21: #{tpu_custom_call.1} parent=19 // pred_check
          %p432 = pneg %p79
        $region22: #{tpu_custom_call.1} parent=19 // pred_check_branch
          %434 = sbr.rel (%p432) target = $region24
        $region23: #{tpu_custom_call.1} parent=19 // pred_region
          %p435 = scmp.lt.s32.totalorder %s29, 1
          %s436 = scalar_select %p435, %s29, 1
          %s437 = smul.addr %s436, 4
          %s438 = smul.addr %s437, 4
          %s439 = scalar_lea.vmem %s1, %s438
        $region24: #{tpu_custom_call.1} parent=19 // pred_fallthru
          _
        // Predicated region
        $region25: #{tpu_custom_call.1} parent=19 // pred_check
          %p440 = pneg %p105
        $region26: #{tpu_custom_call.1} parent=19 // pred_check_branch
          %442 = sbr.rel (%p440) target = $region28
        $region27: #{tpu_custom_call.1} parent=19 // pred_region
          %p443 = scmp.lt.s32.totalorder %s29, 1
          %s444 = scalar_select %p443, %s29, 1
          %s445 = scalar_lea.vmem %s2, %s444
        $region28: #{tpu_custom_call.1} parent=19 // pred_fallthru
          _
        // Predicated region
        $region29: #{tpu_custom_call.1} parent=19 // pred_check
          %p446 = pneg %p131
        $region30: #{tpu_custom_call.1} parent=19 // pred_check_branch
          %448 = sbr.rel (%p446) target = $region32
        $region31: #{tpu_custom_call.1} parent=19 // pred_region
          %p449 = scmp.lt.s32.totalorder %s29, 1
          %s450 = scalar_select %p449, %s29, 1
          %s451 = smul.addr %s450, 4
          %s452 = smul.addr %s451, 4
          %s453 = scalar_lea.vmem %s3, %s452
        $region32: #{tpu_custom_call.1} parent=19 // pred_fallthru
          _
        // Predicated region
        $region33: #{tpu_custom_call.1} parent=19 // pred_check
          %p454 = pneg %p157
        $region34: #{tpu_custom_call.1} parent=19 // pred_check_branch
          %456 = sbr.rel (%p454) target = $region36
        $region35: #{tpu_custom_call.1} parent=19 // pred_region
          %p457 = scmp.lt.s32.totalorder %s29, 1
          %s458 = scalar_select %p457, %s29, 1
          %s459 = scalar_lea.vmem %s4, %s458
        $region36: #{tpu_custom_call.1} parent=19 // pred_fallthru
          _
        // Predicated region
        $region37: #{tpu_custom_call.1} parent=19 // pred_check
          %p460 = pneg %p183
        $region38: #{tpu_custom_call.1} parent=19 // pred_check_branch
          %462 = sbr.rel (%p460) target = $region40
        $region39: #{tpu_custom_call.1} parent=19 // pred_region
          %p463 = scmp.lt.s32.totalorder %s29, 1
          %s464 = scalar_select %p463, %s29, 1
          %s465 = scalar_lea.vmem %s5, %s464
        $region40: #{tpu_custom_call.1} parent=19 // pred_fallthru
          _
        // Predicated region
        $region41: #{tpu_custom_call.1} parent=19 // pred_check
          %p466 = pneg %p209
        $region42: #{tpu_custom_call.1} parent=19 // pred_check_branch
          %468 = sbr.rel (%p466) target = $region44
        $region43: #{tpu_custom_call.1} parent=19 // pred_region
          %p469 = scmp.lt.s32.totalorder %s29, 1
          %s470 = scalar_select %p469, %s29, 1
          %s471 = scalar_lea.vmem %s6, %s470
        $region44: #{tpu_custom_call.1} parent=19 // pred_fallthru
          _
        // Predicated region
        $region45: #{tpu_custom_call.1} parent=19 // pred_check
          %p472 = pneg %p235
        $region46: #{tpu_custom_call.1} parent=19 // pred_check_branch
          %474 = sbr.rel (%p472) target = $region48
        $region47: #{tpu_custom_call.1} parent=19 // pred_region
          %p475 = scmp.lt.s32.totalorder %s29, 1
          %s476 = scalar_select %p475, %s29, 1
          %s477 = smul.addr %s476, 4
          %s478 = smul.addr %s477, 4
          %s479 = scalar_lea.vmem %s7, %s478
        $region48: #{tpu_custom_call.1} parent=19 // pred_fallthru
          _
        // Predicated region
        $region49: #{tpu_custom_call.1} parent=19 // pred_check
          %p480 = pneg %p261
        $region50: #{tpu_custom_call.1} parent=19 // pred_check_branch
          %482 = sbr.rel (%p480) target = $region52
        $region51: #{tpu_custom_call.1} parent=19 // pred_region
          %p483 = scmp.lt.s32.totalorder %s29, 1
          %s484 = scalar_select %p483, %s29, 1
          %s485 = scalar_lea.vmem %s8, %s484
        $region52: #{tpu_custom_call.1} parent=19 // pred_fallthru
          _
        // Predicated region
        $region53: #{tpu_custom_call.1} parent=19 // pred_check
          %p486 = pneg %p287
        $region54: #{tpu_custom_call.1} parent=19 // pred_check_branch
          %488 = sbr.rel (%p486) target = $region56
        $region55: #{tpu_custom_call.1} parent=19 // pred_region
          %p489 = scmp.lt.s32.totalorder %s29, 1
          %s490 = scalar_select %p489, %s29, 1
          %s491 = smul.addr %s490, 8
          %s492 = smul.addr %s491, 4
          %s493 = scalar_lea.vmem %s9, %s492
        $region56: #{tpu_custom_call.1} parent=19 // pred_fallthru
          _
        // Predicated region
        $region57: #{tpu_custom_call.1} parent=19 // pred_check
          %p494 = pneg %p313
        $region58: #{tpu_custom_call.1} parent=19 // pred_check_branch
          %496 = sbr.rel (%p494) target = $region60
        $region59: #{tpu_custom_call.1} parent=19 // pred_region
          %p497 = scmp.lt.s32.totalorder %s29, 1
          %s498 = scalar_select %p497, %s29, 1
          %s499 = scalar_lea.vmem %s10, %s498
        $region60: #{tpu_custom_call.1} parent=19 // pred_fallthru
          _
        // Predicated region
        $region61: #{tpu_custom_call.1} parent=19 // pred_check
          %p500 = pneg %p339
        $region62: #{tpu_custom_call.1} parent=19 // pred_check_branch
          %502 = sbr.rel (%p500) target = $region64
        $region63: #{tpu_custom_call.1} parent=19 // pred_region
          %p503 = scmp.lt.s32.totalorder %s29, 1
          %s504 = scalar_select %p503, %s29, 1
          %s505 = scalar_lea.vmem %s11, %s504
        $region64: #{tpu_custom_call.1} parent=19 // pred_fallthru
          _
        // Predicated region
        $region65: #{tpu_custom_call.1} parent=19 // pred_check
          %p506 = pneg %p365
        $region66: #{tpu_custom_call.1} parent=19 // pred_check_branch
          %508 = sbr.rel (%p506) target = $region68
        $region67: #{tpu_custom_call.1} parent=19 // pred_region
          %p509 = scmp.lt.s32.totalorder %s29, 1
          %s510 = scalar_select %p509, %s29, 1
          %s511 = scalar_lea.vmem %s12, %s510
        $region68: #{tpu_custom_call.1} parent=19 // pred_fallthru
          _
      $region20: #{tpu_custom_call.1} parent=5 // pred_fallthru
        _
      %p512 = scmp.le.s32.totalorder 1, %s21
      %p513 = scmp.lt.s32.totalorder %s21, 3
      %p514 = pnand %p512, %p513
      %p515 = pneg %p514
      // Predicated region
      $region69: #{tpu_custom_call.1} parent=5 // pred_check
        _
      $region70: #{tpu_custom_call.1} parent=5 // pred_check_branch
        %517 = sbr.rel (%p514) target = $region72
      $region71: #{tpu_custom_call.1} parent=5 // pred_region
        %s518 = ssub.s32 %s21, 1
        // Predicated region
        $region73: #{tpu_custom_call.1} parent=71 // pred_check
          %p519 = pneg %p59
        $region74: #{tpu_custom_call.1} parent=71 // pred_check_branch
          %521 = sbr.rel (%p519) target = $region76
        $region75: #{tpu_custom_call.1} parent=71 // pred_region
          %522 = dma.done [#allocation4], 256
        $region76: #{tpu_custom_call.1} parent=71 // pred_fallthru
          _
        %p523 = pneg %p59
        %p524 = pneg %p56
        %p525 = scmp.lt.s32.totalorder %s31, 1
        %s526 = scalar_select %p525, %s31, 1
        %s527 = smul.addr %s526, 4
        %s528 = smul.addr %s527, 4
        %s529 = scalar_lea.vmem %s1, %s528
        %p530 = pneg %p85
        %p531 = pneg %p82
        %p532 = scmp.lt.s32.totalorder %s31, 1
        %s533 = scalar_select %p532, %s31, 1
        %s534 = scalar_lea.vmem %s2, %s533
        %p535 = pneg %p111
        %p536 = pneg %p108
        %p537 = scmp.lt.s32.totalorder %s31, 1
        %s538 = scalar_select %p537, %s31, 1
        %s539 = smul.addr %s538, 4
        %s540 = smul.addr %s539, 4
        %s541 = scalar_lea.vmem %s3, %s540
        %p542 = pneg %p137
        %p543 = pneg %p134
        %p544 = scmp.lt.s32.totalorder %s31, 1
        %s545 = scalar_select %p544, %s31, 1
        %s546 = scalar_lea.vmem %s4, %s545
        %p547 = pneg %p163
        %p548 = pneg %p160
        %p549 = scmp.lt.s32.totalorder %s31, 1
        %s550 = scalar_select %p549, %s31, 1
        %s551 = scalar_lea.vmem %s5, %s550
        %p552 = pneg %p189
        %p553 = pneg %p186
        %p554 = scmp.lt.s32.totalorder %s31, 1
        %s555 = scalar_select %p554, %s31, 1
        %s556 = scalar_lea.vmem %s6, %s555
        %p557 = pneg %p215
        %p558 = pneg %p212
        %p559 = scmp.lt.s32.totalorder %s31, 1
        %s560 = scalar_select %p559, %s31, 1
        %s561 = smul.addr %s560, 4
        %s562 = smul.addr %s561, 4
        %s563 = scalar_lea.vmem %s7, %s562
        %p564 = pneg %p241
        %p565 = pneg %p238
        %p566 = scmp.lt.s32.totalorder %s31, 1
        %s567 = scalar_select %p566, %s31, 1
        %s568 = scalar_lea.vmem %s8, %s567
        %p569 = pneg %p267
        %p570 = pneg %p264
        %p571 = scmp.lt.s32.totalorder %s31, 1
        %s572 = scalar_select %p571, %s31, 1
        %s573 = smul.addr %s572, 8
        %s574 = smul.addr %s573, 4
        %s575 = scalar_lea.vmem %s9, %s574
        %p576 = pneg %p293
        %p577 = pneg %p290
        %p578 = scmp.lt.s32.totalorder %s31, 1
        %s579 = scalar_select %p578, %s31, 1
        %s580 = scalar_lea.vmem %s10, %s579
        %p581 = pneg %p319
        %p582 = pneg %p316
        %p583 = scmp.lt.s32.totalorder %s31, 1
        %s584 = scalar_select %p583, %s31, 1
        %s585 = scalar_lea.vmem %s11, %s584
        %p586 = pneg %p345
        %p587 = pneg %p342
        %p588 = scmp.lt.s32.totalorder %s31, 1
        %s589 = scalar_select %p588, %s31, 1
        %s590 = scalar_lea.vmem %s12, %s589
        %p591 = pneg %p371
        %p592 = pneg %p368
        %p593 = pneg %p397
        %p594 = pneg %p394
        %s595 = smul.u32 2, %s30
        %p596 = scmp.lt.s32.totalorder %s31, 1
        %s597 = scalar_select %p596, %s31, 1
        %s598 = smul.addr %s597, 4
        %s599 = smul.addr %s598, 4
        %s600 = scalar_lea.vmem %s1, %s599
        %p601 = scmp.lt.s32.totalorder %s31, 1
        %s602 = scalar_select %p601, %s31, 1
        %s603 = scalar_lea.vmem %s2, %s602
        %p604 = scmp.lt.s32.totalorder %s31, 1
        %s605 = scalar_select %p604, %s31, 1
        %s606 = smul.addr %s605, 4
        %s607 = smul.addr %s606, 4
        %s608 = scalar_lea.vmem %s3, %s607
        %p609 = scmp.lt.s32.totalorder %s31, 1
        %s610 = scalar_select %p609, %s31, 1
        %s611 = scalar_lea.vmem %s4, %s610
        %p612 = scmp.lt.s32.totalorder %s31, 1
        %s613 = scalar_select %p612, %s31, 1
        %s614 = scalar_lea.vmem %s5, %s613
        %p615 = scmp.lt.s32.totalorder %s31, 1
        %s616 = scalar_select %p615, %s31, 1
        %s617 = scalar_lea.vmem %s6, %s616
        %p618 = scmp.lt.s32.totalorder %s31, 1
        %s619 = scalar_select %p618, %s31, 1
        %s620 = smul.addr %s619, 4
        %s621 = smul.addr %s620, 4
        %s622 = scalar_lea.vmem %s7, %s621
        %p623 = scmp.lt.s32.totalorder %s31, 1
        %s624 = scalar_select %p623, %s31, 1
        %s625 = scalar_lea.vmem %s8, %s624
        %p626 = scmp.lt.s32.totalorder %s31, 1
        %s627 = scalar_select %p626, %s31, 1
        %s628 = smul.addr %s627, 8
        %s629 = smul.addr %s628, 4
        %s630 = scalar_lea.vmem %s9, %s629
        %p631 = scmp.lt.s32.totalorder %s31, 1
        %s632 = scalar_select %p631, %s31, 1
        %s633 = scalar_lea.vmem %s10, %s632
        %p634 = scmp.lt.s32.totalorder %s31, 1
        %s635 = scalar_select %p634, %s31, 1
        %s636 = scalar_lea.vmem %s11, %s635
        %p637 = scmp.lt.s32.totalorder %s31, 1
        %s638 = scalar_select %p637, %s31, 1
        %s639 = scalar_lea.vmem %s12, %s638
        %s640 = smul.u32 2, %s30
        %p642 = scmp.eq.s32.totalorder %s31, 0
        // Predicated region
        $region77: #{tpu_custom_call.1} parent=71 // pred_check
          %p643 = pneg %p642
        $region78: #{tpu_custom_call.1} parent=71 // pred_check_branch
          %645 = sbr.rel (%p643) target = $region80
        $region79: #{tpu_custom_call.1} parent=71 // pred_region
          %v646 = vld [vmem:[#allocation3] sm:$0xff]
          %v647 = vld [vmem:[#allocation3 + $0x8] sm:$0xff]
          %vm648 = vcmask 261120
          %649 = vst.msk [vmem:[#allocation2] sm:$0xff] %vm648, %v646
          %650 = vst.msk [vmem:[#allocation2 + $0x8] sm:$0xff] %vm648, %v647
        $region80: #{tpu_custom_call.1} parent=71 // pred_fallthru
          _
        %v651 = vld [vmem:[#allocation2] sm:$0xff]
        %v652 = vld [vmem:[#allocation2 + $0x8] sm:$0xff]
        %v653 = vpack.c.bf16 %v652, %v651
        %v654 = vld [vmem:[%s600] sm:$0xf]
        %v655 = vld [vmem:[%s600 + $0x4] sm:$0xf]
        %v656 = vld [vmem:[%s600 + $0x8] sm:$0xf]
        %v657 = vld [vmem:[%s600 + $0xc] sm:$0xf]
        %v658 = vld [vmem:[%s603] sm:$0x1]
        %v660 = vlaneseq
        %v661 = vshrl.u32 %v660, 7
        %v662 = vsub.s32 0, %v661
        %v663 = vrot.slane %v658, %v662
        %v669 = vunpack.c.l.b16 %v654
        %v670 = vunpack.c.l.b16 %v655
        %v671 = vunpack.c.l.b16 %v656
        %v672 = vunpack.c.l.b16 %v657
        %v673 = vpack.c.b16 %v670, %v669
        %v674 = vpack.c.b16 %v672, %v671
        %vm677 = vcmask 261120
        %v679 = vsel %vm677, %v653, 0
        %681 = vmatprep.subr.bf16.mxu0 0
        %682 = vmatpush1.bf16.msra.mxu0 0
        %683 = vmatprep.subr.bf16.mxu0 0
        %684 = vmatpush1.bf16.msra.mxu0 0
        %685 = vmatprep.subr.bf16.mxu0 0
        %686 = vmatpush1.bf16.msra.mxu0 0
        %687 = vmatprep.subr.bf16.mxu0 0
        %688 = vmatpush1.bf16.msra.mxu0 0
        %689 = vmatprep.subr.bf16.mxu0 0
        %690 = vmatpush1.bf16.msra.mxu0 0
        %691 = vmatprep.subr.bf16.mxu0 0
        %692 = vmatpush1.bf16.msra.mxu0 0
        %693 = vmatprep.subr.bf16.mxu0 0
        %694 = vmatpush1.bf16.msra.mxu0 %v674
        %695 = vmatprep.subr.bf16.mxu0 0
        %696 = vmatpush1.bf16.msra.mxu0 %v673
        %697 = vmatprep.subr.bf16.mxu0 0
        %698 = vmatpush2.bf16.msra.mxu0 0
        %699 = vmatprep.subr.bf16.mxu0 0
        %700 = vmatpush2.bf16.msra.mxu0 0
        %701 = vmatprep.subr.bf16.mxu0 0
        %702 = vmatpush2.bf16.msra.mxu0 0
        %703 = vmatprep.subr.bf16.mxu0 0
        %704 = vmatpush2.bf16.msra.mxu0 0
        %705 = vmatprep.subr.bf16.mxu0 0
        %706 = vmatpush2.bf16.msra.mxu0 0
        %707 = vmatprep.subr.bf16.mxu0 0
        %708 = vmatpush2.bf16.msra.mxu0 0
        %709 = vmatprep.subr.bf16.mxu0 0
        %710 = vmatpush2.bf16.msra.mxu0 0
        %711 = vmatprep.subr.bf16.mxu0 0
        %712 = vmatpush2.bf16.msra.mxu0 0
        %713 = vmatprep.mubr.bf16.mxu0 0
        %714 = vmatmul.mubr.bf16.gmra.mxu0 %v679
        %v715 = vpop.f32.mrf.mxu0
        %v716 = vadd.f32 %v663, %v715
        %v717 = vpop.f32.mrf.mxu0
        %v718 = vpop.f32.mrf.mxu0
        %v719 = vadd.f32 %v663, %v718
        %v720 = vpop.f32.mrf.mxu0
        %721 = vdwg.mxu0
        %v722 = vpack.c.bf16 %v716, %v716
        %v723 = vpack.c.bf16 %v719, %v719
        %725 = vrot.lane.b32.xlu0 %v722, 96
        %v726 = vpop.permute.xlu0 %725
        %vm727 = vcmask 64512
        %v729 = vsel %vm727, %v722, 0
        %v732 = vsel %vm727, %v726, 0
        %734 = vmatprep.subr.bf16.mxu0 0
        %735 = vmatpush1.bf16.xpose.msra.mxu0 0
        %736 = vmatprep.subr.bf16.mxu0 0
        %737 = vmatpush1.bf16.xpose.msra.mxu0 0
        %738 = vmatprep.subr.bf16.mxu0 0
        %739 = vmatpush1.bf16.xpose.msra.mxu0 0
        %740 = vmatprep.subr.bf16.mxu0 0
        %741 = vmatpush1.bf16.xpose.msra.mxu0 0
        %742 = vmatprep.subr.bf16.mxu0 0
        %743 = vmatpush1.bf16.xpose.msra.mxu0 0
        %744 = vmatprep.subr.bf16.mxu0 0
        %745 = vmatpush1.bf16.xpose.msra.mxu0 0
        %746 = vmatprep.subr.bf16.mxu0 0
        %747 = vmatpush1.bf16.xpose.msra.mxu0 0
        %748 = vmatprep.subr.bf16.mxu0 0
        %749 = vmatpush1.bf16.xpose.msra.mxu0 %v732
        %750 = vmatprep.subr.bf16.mxu0 0
        %751 = vmatpush2.bf16.xpose.msra.mxu0 0
        %752 = vmatprep.subr.bf16.mxu0 0
        %753 = vmatpush2.bf16.xpose.msra.mxu0 0
        %754 = vmatprep.subr.bf16.mxu0 0
        %755 = vmatpush2.bf16.xpose.msra.mxu0 0
        %756 = vmatprep.subr.bf16.mxu0 0
        %757 = vmatpush2.bf16.xpose.msra.mxu0 0
        %758 = vmatprep.subr.bf16.mxu0 0
        %759 = vmatpush2.bf16.xpose.msra.mxu0 0
        %760 = vmatprep.subr.bf16.mxu0 0
        %761 = vmatpush2.bf16.xpose.msra.mxu0 0
        %762 = vmatprep.subr.bf16.mxu0 0
        %763 = vmatpush2.bf16.xpose.msra.mxu0 0
        %764 = vmatprep.subr.bf16.mxu0 0
        %765 = vmatpush2.bf16.xpose.msra.mxu0 0
        %766 = vmatprep.mubr.bf16.mxu0 0
        %767 = vmatmul.mubr.bf16.gmra.mxu0 %v729
        %v768 = vpop.f32.mrf.mxu0
        %v769 = vadd.f32 0.0, %v768
        %v770 = vpop.f32.mrf.mxu0
        %v771 = vpop.f32.mrf.mxu0
        %v772 = vpop.f32.mrf.mxu0
        %773 = vdwg.mxu0
        %775 = vrot.lane.b32.xlu0 %v723, 96
        %v776 = vpop.permute.xlu0 %775
        %v778 = vsel %vm727, %v723, 0
        %v781 = vsel %vm727, %v776, 0
        %783 = vmatprep.subr.bf16.mxu0 0
        %784 = vmatpush1.bf16.xpose.msra.mxu0 0
        %785 = vmatprep.subr.bf16.mxu0 0
        %786 = vmatpush1.bf16.xpose.msra.mxu0 0
        %787 = vmatprep.subr.bf16.mxu0 0
        %788 = vmatpush1.bf16.xpose.msra.mxu0 0
        %789 = vmatprep.subr.bf16.mxu0 0
        %790 = vmatpush1.bf16.xpose.msra.mxu0 0
        %791 = vmatprep.subr.bf16.mxu0 0
        %792 = vmatpush1.bf16.xpose.msra.mxu0 0
        %793 = vmatprep.subr.bf16.mxu0 0
        %794 = vmatpush1.bf16.xpose.msra.mxu0 0
        %795 = vmatprep.subr.bf16.mxu0 0
        %796 = vmatpush1.bf16.xpose.msra.mxu0 0
        %797 = vmatprep.subr.bf16.mxu0 0
        %798 = vmatpush1.bf16.xpose.msra.mxu0 %v781
        %799 = vmatprep.subr.bf16.mxu0 0
        %800 = vmatpush2.bf16.xpose.msra.mxu0 0
        %801 = vmatprep.subr.bf16.mxu0 0
        %802 = vmatpush2.bf16.xpose.msra.mxu0 0
        %803 = vmatprep.subr.bf16.mxu0 0
        %804 = vmatpush2.bf16.xpose.msra.mxu0 0
        %805 = vmatprep.subr.bf16.mxu0 0
        %806 = vmatpush2.bf16.xpose.msra.mxu0 0
        %807 = vmatprep.subr.bf16.mxu0 0
        %808 = vmatpush2.bf16.xpose.msra.mxu0 0
        %809 = vmatprep.subr.bf16.mxu0 0
        %810 = vmatpush2.bf16.xpose.msra.mxu0 0
        %811 = vmatprep.subr.bf16.mxu0 0
        %812 = vmatpush2.bf16.xpose.msra.mxu0 0
        %813 = vmatprep.subr.bf16.mxu0 0
        %814 = vmatpush2.bf16.xpose.msra.mxu0 0
        %815 = vmatprep.mubr.bf16.mxu0 0
        %816 = vmatmul.mubr.bf16.gmra.mxu0 %v778
        %v817 = vpop.f32.mrf.mxu0
        %v818 = vadd.f32 0.0, %v817
        %v819 = vpop.f32.mrf.mxu0
        %v820 = vpop.f32.mrf.mxu0
        %v821 = vpop.f32.mrf.mxu0
        %822 = vdwg.mxu0
        %v823 = vsel %vm727, %v769, -inf
        %824 = vmax.xlane.f32.xlu0 %v823
        %v825 = vpop.xlane.xlu0 %824
        %v826 = vsel %vm727, %v818, -inf
        %827 = vmax.xlane.f32.xlu0 %v826
        %v828 = vpop.xlane.xlu0 %827
        %v829 = vsub.f32 %v769, %v825
        %v830 = vsub.f32 %v818, %v828
        %v831 = vmul.f32 %v829, 1.442695
        %v832 = vpow.pop %v831
        %v833 = vmul.f32 %v830, 1.442695
        %v834 = vpow.pop %v833
        %v835 = vsel %vm727, %v832, 0.0
        %836 = vadd.xlane.f32.xlu0 %v835
        %v837 = vpop.xlane.xlu0 %836
        %v838 = vsel %vm727, %v834, 0.0
        %839 = vadd.xlane.f32.xlu0 %v838
        %v840 = vpop.xlane.xlu0 %839
        %v841 = vrcp.pop %v837
        %v842 = vrcp.pop %v840
        %v843 = vmul.f32 %v832, %v841
        %v844 = vmul.f32 %v834, %v842
        %v845 = vpack.c.bf16 %v843, %v843
        %v846 = vpack.c.bf16 %v844, %v844
        %847 = vrot.lane.b32.xlu0 %v722, 64
        %v848 = vpop.permute.xlu0 %847
        %v850 = vsel %vm727, %v845, 0
        %vm852 = vcmask 1043456
        %v854 = vsel %vm852, %v848, 0
        %856 = vmatprep.subr.bf16.mxu0 0
        %857 = vmatpush1.bf16.msra.mxu0 0
        %858 = vmatprep.subr.bf16.mxu0 0
        %859 = vmatpush1.bf16.msra.mxu0 0
        %860 = vmatprep.subr.bf16.mxu0 0
        %861 = vmatpush1.bf16.msra.mxu0 0
        %862 = vmatprep.subr.bf16.mxu0 0
        %863 = vmatpush1.bf16.msra.mxu0 0
        %864 = vmatprep.subr.bf16.mxu0 0
        %865 = vmatpush1.bf16.msra.mxu0 0
        %866 = vmatprep.subr.bf16.mxu0 0
        %867 = vmatpush1.bf16.msra.mxu0 0
        %868 = vmatprep.subr.bf16.mxu0 0
        %869 = vmatpush1.bf16.msra.mxu0 0
        %870 = vmatprep.subr.bf16.mxu0 0
        %871 = vmatpush1.bf16.msra.mxu0 %v854
        %872 = vmatprep.subr.bf16.mxu0 0
        %873 = vmatpush2.bf16.msra.mxu0 0
        %874 = vmatprep.subr.bf16.mxu0 0
        %875 = vmatpush2.bf16.msra.mxu0 0
        %876 = vmatprep.subr.bf16.mxu0 0
        %877 = vmatpush2.bf16.msra.mxu0 0
        %878 = vmatprep.subr.bf16.mxu0 0
        %879 = vmatpush2.bf16.msra.mxu0 0
        %880 = vmatprep.subr.bf16.mxu0 0
        %881 = vmatpush2.bf16.msra.mxu0 0
        %882 = vmatprep.subr.bf16.mxu0 0
        %883 = vmatpush2.bf16.msra.mxu0 0
        %884 = vmatprep.subr.bf16.mxu0 0
        %885 = vmatpush2.bf16.msra.mxu0 0
        %886 = vmatprep.subr.bf16.mxu0 0
        %887 = vmatpush2.bf16.msra.mxu0 0
        %888 = vmatprep.mubr.bf16.mxu0 0
        %889 = vmatmul.mubr.bf16.gmra.mxu0 %v850
        %v890 = vpop.f32.mrf.mxu0
        %v891 = vadd.f32 0.0, %v890
        %v892 = vpop.f32.mrf.mxu0
        %v893 = vpop.f32.mrf.mxu0
        %v894 = vpop.f32.mrf.mxu0
        %895 = vdwg.mxu0
        %896 = vrot.lane.b32.xlu0 %v723, 64
        %v897 = vpop.permute.xlu0 %896
        %v899 = vsel %vm727, %v846, 0
        %v902 = vsel %vm852, %v897, 0
        %904 = vmatprep.subr.bf16.mxu0 0
        %905 = vmatpush1.bf16.msra.mxu0 0
        %906 = vmatprep.subr.bf16.mxu0 0
        %907 = vmatpush1.bf16.msra.mxu0 0
        %908 = vmatprep.subr.bf16.mxu0 0
        %909 = vmatpush1.bf16.msra.mxu0 0
        %910 = vmatprep.subr.bf16.mxu0 0
        %911 = vmatpush1.bf16.msra.mxu0 0
        %912 = vmatprep.subr.bf16.mxu0 0
        %913 = vmatpush1.bf16.msra.mxu0 0
        %914 = vmatprep.subr.bf16.mxu0 0
        %915 = vmatpush1.bf16.msra.mxu0 0
        %916 = vmatprep.subr.bf16.mxu0 0
        %917 = vmatpush1.bf16.msra.mxu0 0
        %918 = vmatprep.subr.bf16.mxu0 0
        %919 = vmatpush1.bf16.msra.mxu0 %v902
        %920 = vmatprep.subr.bf16.mxu0 0
        %921 = vmatpush2.bf16.msra.mxu0 0
        %922 = vmatprep.subr.bf16.mxu0 0
        %923 = vmatpush2.bf16.msra.mxu0 0
        %924 = vmatprep.subr.bf16.mxu0 0
        %925 = vmatpush2.bf16.msra.mxu0 0
        %926 = vmatprep.subr.bf16.mxu0 0
        %927 = vmatpush2.bf16.msra.mxu0 0
        %928 = vmatprep.subr.bf16.mxu0 0
        %929 = vmatpush2.bf16.msra.mxu0 0
        %930 = vmatprep.subr.bf16.mxu0 0
        %931 = vmatpush2.bf16.msra.mxu0 0
        %932 = vmatprep.subr.bf16.mxu0 0
        %933 = vmatpush2.bf16.msra.mxu0 0
        %934 = vmatprep.subr.bf16.mxu0 0
        %935 = vmatpush2.bf16.msra.mxu0 0
        %936 = vmatprep.mubr.bf16.mxu0 0
        %937 = vmatmul.mubr.bf16.gmra.mxu0 %v899
        %v938 = vpop.f32.mrf.mxu0
        %v939 = vadd.f32 0.0, %v938
        %v940 = vpop.f32.mrf.mxu0
        %v941 = vpop.f32.mrf.mxu0
        %v942 = vpop.f32.mrf.mxu0
        %943 = vdwg.mxu0
        %v944 = vpack.c.bf16 %v939, %v891
        %v945 = vld [vmem:[%s608] sm:$0xf]
        %946 = vrot.lane.b32.xlu0 %v722, 120
        %v947 = vpop.permute.xlu0 %946
        %948 = vrot.lane.b32.xlu0 %v722, 88
        %v949 = vpop.permute.xlu0 %948
        %v951 = vsel %vm727, %v947, 0
        %v954 = vsel %vm727, %v949, 0
        %956 = vmatprep.subr.bf16.mxu0 0
        %957 = vmatpush1.bf16.xpose.msra.mxu0 0
        %958 = vmatprep.subr.bf16.mxu0 0
        %959 = vmatpush1.bf16.xpose.msra.mxu0 0
        %960 = vmatprep.subr.bf16.mxu0 0
        %961 = vmatpush1.bf16.xpose.msra.mxu0 0
        %962 = vmatprep.subr.bf16.mxu0 0
        %963 = vmatpush1.bf16.xpose.msra.mxu0 0
        %964 = vmatprep.subr.bf16.mxu0 0
        %965 = vmatpush1.bf16.xpose.msra.mxu0 0
        %966 = vmatprep.subr.bf16.mxu0 0
        %967 = vmatpush1.bf16.xpose.msra.mxu0 0
        %968 = vmatprep.subr.bf16.mxu0 0
        %969 = vmatpush1.bf16.xpose.msra.mxu0 0
        %970 = vmatprep.subr.bf16.mxu0 0
        %971 = vmatpush1.bf16.xpose.msra.mxu0 %v954
        %972 = vmatprep.subr.bf16.mxu0 0
        %973 = vmatpush2.bf16.xpose.msra.mxu0 0
        %974 = vmatprep.subr.bf16.mxu0 0
        %975 = vmatpush2.bf16.xpose.msra.mxu0 0
        %976 = vmatprep.subr.bf16.mxu0 0
        %977 = vmatpush2.bf16.xpose.msra.mxu0 0
        %978 = vmatprep.subr.bf16.mxu0 0
        %979 = vmatpush2.bf16.xpose.msra.mxu0 0
        %980 = vmatprep.subr.bf16.mxu0 0
        %981 = vmatpush2.bf16.xpose.msra.mxu0 0
        %982 = vmatprep.subr.bf16.mxu0 0
        %983 = vmatpush2.bf16.xpose.msra.mxu0 0
        %984 = vmatprep.subr.bf16.mxu0 0
        %985 = vmatpush2.bf16.xpose.msra.mxu0 0
        %986 = vmatprep.subr.bf16.mxu0 0
        %987 = vmatpush2.bf16.xpose.msra.mxu0 0
        %988 = vmatprep.mubr.bf16.mxu0 0
        %989 = vmatmul.mubr.bf16.gmra.mxu0 %v951
        %v990 = vpop.f32.mrf.mxu0
        %v991 = vadd.f32 0.0, %v990
        %v992 = vpop.f32.mrf.mxu0
        %v993 = vpop.f32.mrf.mxu0
        %v994 = vpop.f32.mrf.mxu0
        %995 = vdwg.mxu0
        %996 = vrot.lane.b32.xlu0 %v723, 120
        %v997 = vpop.permute.xlu0 %996
        %998 = vrot.lane.b32.xlu0 %v723, 88
        %v999 = vpop.permute.xlu0 %998
        %v1001 = vsel %vm727, %v997, 0
        %v1004 = vsel %vm727, %v999, 0
        %1006 = vmatprep.subr.bf16.mxu0 0
        %1007 = vmatpush1.bf16.xpose.msra.mxu0 0
        %1008 = vmatprep.subr.bf16.mxu0 0
        %1009 = vmatpush1.bf16.xpose.msra.mxu0 0
        %1010 = vmatprep.subr.bf16.mxu0 0
        %1011 = vmatpush1.bf16.xpose.msra.mxu0 0
        %1012 = vmatprep.subr.bf16.mxu0 0
        %1013 = vmatpush1.bf16.xpose.msra.mxu0 0
        %1014 = vmatprep.subr.bf16.mxu0 0
        %1015 = vmatpush1.bf16.xpose.msra.mxu0 0
        %1016 = vmatprep.subr.bf16.mxu0 0
        %1017 = vmatpush1.bf16.xpose.msra.mxu0 0
        %1018 = vmatprep.subr.bf16.mxu0 0
        %1019 = vmatpush1.bf16.xpose.msra.mxu0 0
        %1020 = vmatprep.subr.bf16.mxu0 0
        %1021 = vmatpush1.bf16.xpose.msra.mxu0 %v1004
        %1022 = vmatprep.subr.bf16.mxu0 0
        %1023 = vmatpush2.bf16.xpose.msra.mxu0 0
        %1024 = vmatprep.subr.bf16.mxu0 0
        %1025 = vmatpush2.bf16.xpose.msra.mxu0 0
        %1026 = vmatprep.subr.bf16.mxu0 0
        %1027 = vmatpush2.bf16.xpose.msra.mxu0 0
        %1028 = vmatprep.subr.bf16.mxu0 0
        %1029 = vmatpush2.bf16.xpose.msra.mxu0 0
        %1030 = vmatprep.subr.bf16.mxu0 0
        %1031 = vmatpush2.bf16.xpose.msra.mxu0 0
        %1032 = vmatprep.subr.bf16.mxu0 0
        %1033 = vmatpush2.bf16.xpose.msra.mxu0 0
        %1034 = vmatprep.subr.bf16.mxu0 0
        %1035 = vmatpush2.bf16.xpose.msra.mxu0 0
        %1036 = vmatprep.subr.bf16.mxu0 0
        %1037 = vmatpush2.bf16.xpose.msra.mxu0 0
        %1038 = vmatprep.mubr.bf16.mxu0 0
        %1039 = vmatmul.mubr.bf16.gmra.mxu0 %v1001
        %v1040 = vpop.f32.mrf.mxu0
        %v1041 = vadd.f32 0.0, %v1040
        %v1042 = vpop.f32.mrf.mxu0
        %v1043 = vpop.f32.mrf.mxu0
        %v1044 = vpop.f32.mrf.mxu0
        %1045 = vdwg.mxu0
        %v1046 = vsel %vm727, %v991, -inf
        %1047 = vmax.xlane.f32.xlu0 %v1046
        %v1048 = vpop.xlane.xlu0 %1047
        %v1049 = vsel %vm727, %v1041, -inf
        %1050 = vmax.xlane.f32.xlu0 %v1049
        %v1051 = vpop.xlane.xlu0 %1050
        %v1052 = vsub.f32 %v991, %v1048
        %v1053 = vsub.f32 %v1041, %v1051
        %v1054 = vmul.f32 %v1052, 1.442695
        %v1055 = vpow.pop %v1054
        %v1056 = vmul.f32 %v1053, 1.442695
        %v1057 = vpow.pop %v1056
        %v1058 = vsel %vm727, %v1055, 0.0
        %1059 = vadd.xlane.f32.xlu0 %v1058
        %v1060 = vpop.xlane.xlu0 %1059
        %v1061 = vsel %vm727, %v1057, 0.0
        %1062 = vadd.xlane.f32.xlu0 %v1061
        %v1063 = vpop.xlane.xlu0 %1062
        %v1064 = vrcp.pop %v1060
        %v1065 = vrcp.pop %v1063
        %v1066 = vmul.f32 %v1055, %v1064
        %v1067 = vmul.f32 %v1057, %v1065
        %v1068 = vpack.c.bf16 %v1066, %v1066
        %v1069 = vpack.c.bf16 %v1067, %v1067
        %1070 = vrot.lane.b32.xlu0 %v722, 56
        %v1071 = vpop.permute.xlu0 %1070
        %v1073 = vsel %vm727, %v1068, 0
        %v1076 = vsel %vm852, %v1071, 0
        %1078 = vmatprep.subr.bf16.mxu0 0
        %1079 = vmatpush1.bf16.msra.mxu0 0
        %1080 = vmatprep.subr.bf16.mxu0 0
        %1081 = vmatpush1.bf16.msra.mxu0 0
        %1082 = vmatprep.subr.bf16.mxu0 0
        %1083 = vmatpush1.bf16.msra.mxu0 0
        %1084 = vmatprep.subr.bf16.mxu0 0
        %1085 = vmatpush1.bf16.msra.mxu0 0
        %1086 = vmatprep.subr.bf16.mxu0 0
        %1087 = vmatpush1.bf16.msra.mxu0 0
        %1088 = vmatprep.subr.bf16.mxu0 0
        %1089 = vmatpush1.bf16.msra.mxu0 0
        %1090 = vmatprep.subr.bf16.mxu0 0
        %1091 = vmatpush1.bf16.msra.mxu0 0
        %1092 = vmatprep.subr.bf16.mxu0 0
        %1093 = vmatpush1.bf16.msra.mxu0 %v1076
        %1094 = vmatprep.subr.bf16.mxu0 0
        %1095 = vmatpush2.bf16.msra.mxu0 0
        %1096 = vmatprep.subr.bf16.mxu0 0
        %1097 = vmatpush2.bf16.msra.mxu0 0
        %1098 = vmatprep.subr.bf16.mxu0 0
        %1099 = vmatpush2.bf16.msra.mxu0 0
        %1100 = vmatprep.subr.bf16.mxu0 0
        %1101 = vmatpush2.bf16.msra.mxu0 0
        %1102 = vmatprep.subr.bf16.mxu0 0
        %1103 = vmatpush2.bf16.msra.mxu0 0
        %1104 = vmatprep.subr.bf16.mxu0 0
        %1105 = vmatpush2.bf16.msra.mxu0 0
        %1106 = vmatprep.subr.bf16.mxu0 0
        %1107 = vmatpush2.bf16.msra.mxu0 0
        %1108 = vmatprep.subr.bf16.mxu0 0
        %1109 = vmatpush2.bf16.msra.mxu0 0
        %1110 = vmatprep.mubr.bf16.mxu0 0
        %1111 = vmatmul.mubr.bf16.gmra.mxu0 %v1073
        %v1112 = vpop.f32.mrf.mxu0
        %v1113 = vadd.f32 0.0, %v1112
        %v1114 = vpop.f32.mrf.mxu0
        %v1115 = vpop.f32.mrf.mxu0
        %v1116 = vpop.f32.mrf.mxu0
        %1117 = vdwg.mxu0
        %1118 = vrot.lane.b32.xlu0 %v723, 56
        %v1119 = vpop.permute.xlu0 %1118
        %v1121 = vsel %vm727, %v1069, 0
        %v1124 = vsel %vm852, %v1119, 0
        %1126 = vmatprep.subr.bf16.mxu0 0
        %1127 = vmatpush1.bf16.msra.mxu0 0
        %1128 = vmatprep.subr.bf16.mxu0 0
        %1129 = vmatpush1.bf16.msra.mxu0 0
        %1130 = vmatprep.subr.bf16.mxu0 0
        %1131 = vmatpush1.bf16.msra.mxu0 0
        %1132 = vmatprep.subr.bf16.mxu0 0
        %1133 = vmatpush1.bf16.msra.mxu0 0
        %1134 = vmatprep.subr.bf16.mxu0 0
        %1135 = vmatpush1.bf16.msra.mxu0 0
        %1136 = vmatprep.subr.bf16.mxu0 0
        %1137 = vmatpush1.bf16.msra.mxu0 0
        %1138 = vmatprep.subr.bf16.mxu0 0
        %1139 = vmatpush1.bf16.msra.mxu0 0
        %1140 = vmatprep.subr.bf16.mxu0 0
        %1141 = vmatpush1.bf16.msra.mxu0 %v1124
        %1142 = vmatprep.subr.bf16.mxu0 0
        %1143 = vmatpush2.bf16.msra.mxu0 0
        %1144 = vmatprep.subr.bf16.mxu0 0
        %1145 = vmatpush2.bf16.msra.mxu0 0
        %1146 = vmatprep.subr.bf16.mxu0 0
        %1147 = vmatpush2.bf16.msra.mxu0 0
        %1148 = vmatprep.subr.bf16.mxu0 0
        %1149 = vmatpush2.bf16.msra.mxu0 0
        %1150 = vmatprep.subr.bf16.mxu0 0
        %1151 = vmatpush2.bf16.msra.mxu0 0
        %1152 = vmatprep.subr.bf16.mxu0 0
        %1153 = vmatpush2.bf16.msra.mxu0 0
        %1154 = vmatprep.subr.bf16.mxu0 0
        %1155 = vmatpush2.bf16.msra.mxu0 0
        %1156 = vmatprep.subr.bf16.mxu0 0
        %1157 = vmatpush2.bf16.msra.mxu0 0
        %1158 = vmatprep.mubr.bf16.mxu0 0
        %1159 = vmatmul.mubr.bf16.gmra.mxu0 %v1121
        %v1160 = vpop.f32.mrf.mxu0
        %v1161 = vadd.f32 0.0, %v1160
        %v1162 = vpop.f32.mrf.mxu0
        %v1163 = vpop.f32.mrf.mxu0
        %v1164 = vpop.f32.mrf.mxu0
        %1165 = vdwg.mxu0
        %v1166 = vpack.c.bf16 %v1161, %v1113
        %s1167 = scalar_lea.vmem %s608, 4
        %v1168 = vld [vmem:[%s1167] sm:$0xf]
        %v1170 = vsel %vm727, %v1166, 0
        %v1173 = vsel %vm852, %v1168, 0
        %1175 = vmatprep.subr.bf16.mxu0 0
        %1176 = vmatpush1.bf16.msra.mxu0 0
        %1177 = vmatprep.subr.bf16.mxu0 0
        %1178 = vmatpush1.bf16.msra.mxu0 0
        %1179 = vmatprep.subr.bf16.mxu0 0
        %1180 = vmatpush1.bf16.msra.mxu0 0
        %1181 = vmatprep.subr.bf16.mxu0 0
        %1182 = vmatpush1.bf16.msra.mxu0 0
        %1183 = vmatprep.subr.bf16.mxu0 0
        %1184 = vmatpush1.bf16.msra.mxu0 0
        %1185 = vmatprep.subr.bf16.mxu0 0
        %1186 = vmatpush1.bf16.msra.mxu0 0
        %1187 = vmatprep.subr.bf16.mxu0 0
        %1188 = vmatpush1.bf16.msra.mxu0 0
        %1189 = vmatprep.subr.bf16.mxu0 0
        %1190 = vmatpush1.bf16.msra.mxu0 %v1173
        %1191 = vmatprep.subr.bf16.mxu0 0
        %1192 = vmatpush2.bf16.msra.mxu0 0
        %1193 = vmatprep.subr.bf16.mxu0 0
        %1194 = vmatpush2.bf16.msra.mxu0 0
        %1195 = vmatprep.subr.bf16.mxu0 0
        %1196 = vmatpush2.bf16.msra.mxu0 0
        %1197 = vmatprep.subr.bf16.mxu0 0
        %1198 = vmatpush2.bf16.msra.mxu0 0
        %1199 = vmatprep.subr.bf16.mxu0 0
        %1200 = vmatpush2.bf16.msra.mxu0 0
        %1201 = vmatprep.subr.bf16.mxu0 0
        %1202 = vmatpush2.bf16.msra.mxu0 0
        %1203 = vmatprep.subr.bf16.mxu0 0
        %1204 = vmatpush2.bf16.msra.mxu0 0
        %1205 = vmatprep.subr.bf16.mxu0 0
        %1206 = vmatpush2.bf16.msra.mxu0 0
        %1207 = vmatprep.mubr.bf16.mxu0 0
        %1208 = vmatmul.mubr.bf16.gmra.mxu0 %v1170
        %v1209 = vpop.f32.mrf.mxu0
        %v1210 = vadd.f32 0.0, %v1209
        %v1211 = vpop.f32.mrf.mxu0
        %v1212 = vpop.f32.mrf.mxu0
        %v1213 = vadd.f32 0.0, %v1212
        %v1214 = vpop.f32.mrf.mxu0
        %1215 = vdwg.mxu0
        %v1217 = vsel %vm727, %v944, 0
        %v1220 = vsel %vm852, %v945, 0
        %1222 = vmatprep.subr.bf16.mxu0 0
        %1223 = vmatpush1.bf16.msra.mxu0 0
        %1224 = vmatprep.subr.bf16.mxu0 0
        %1225 = vmatpush1.bf16.msra.mxu0 0
        %1226 = vmatprep.subr.bf16.mxu0 0
        %1227 = vmatpush1.bf16.msra.mxu0 0
        %1228 = vmatprep.subr.bf16.mxu0 0
        %1229 = vmatpush1.bf16.msra.mxu0 0
        %1230 = vmatprep.subr.bf16.mxu0 0
        %1231 = vmatpush1.bf16.msra.mxu0 0
        %1232 = vmatprep.subr.bf16.mxu0 0
        %1233 = vmatpush1.bf16.msra.mxu0 0
        %1234 = vmatprep.subr.bf16.mxu0 0
        %1235 = vmatpush1.bf16.msra.mxu0 0
        %1236 = vmatprep.subr.bf16.mxu0 0
        %1237 = vmatpush1.bf16.msra.mxu0 %v1220
        %1238 = vmatprep.subr.bf16.mxu0 0
        %1239 = vmatpush2.bf16.msra.mxu0 0
        %1240 = vmatprep.subr.bf16.mxu0 0
        %1241 = vmatpush2.bf16.msra.mxu0 0
        %1242 = vmatprep.subr.bf16.mxu0 0
        %1243 = vmatpush2.bf16.msra.mxu0 0
        %1244 = vmatprep.subr.bf16.mxu0 0
        %1245 = vmatpush2.bf16.msra.mxu0 0
        %1246 = vmatprep.subr.bf16.mxu0 0
        %1247 = vmatpush2.bf16.msra.mxu0 0
        %1248 = vmatprep.subr.bf16.mxu0 0
        %1249 = vmatpush2.bf16.msra.mxu0 0
        %1250 = vmatprep.subr.bf16.mxu0 0
        %1251 = vmatpush2.bf16.msra.mxu0 0
        %1252 = vmatprep.subr.bf16.mxu0 0
        %1253 = vmatpush2.bf16.msra.mxu0 0
        %1254 = vmatprep.mubr.bf16.mxu0 0
        %1255 = vmatmul.mubr.bf16.gmra.mxu0 %v1217
        %v1256 = vpop.f32.mrf.mxu0
        %v1257 = vadd.f32 %v1210, %v1256
        %v1258 = vpop.f32.mrf.mxu0
        %v1259 = vpop.f32.mrf.mxu0
        %v1260 = vadd.f32 %v1213, %v1259
        %v1261 = vpop.f32.mrf.mxu0
        %1262 = vdwg.mxu0
        %1263 = vrot.lane.b32.xlu0 %v722, 112
        %v1264 = vpop.permute.xlu0 %1263
        %1265 = vrot.lane.b32.xlu0 %v722, 80
        %v1266 = vpop.permute.xlu0 %1265
        %v1268 = vsel %vm727, %v1264, 0
        %v1271 = vsel %vm727, %v1266, 0
        %1273 = vmatprep.subr.bf16.mxu0 0
        %1274 = vmatpush1.bf16.xpose.msra.mxu0 0
        %1275 = vmatprep.subr.bf16.mxu0 0
        %1276 = vmatpush1.bf16.xpose.msra.mxu0 0
        %1277 = vmatprep.subr.bf16.mxu0 0
        %1278 = vmatpush1.bf16.xpose.msra.mxu0 0
        %1279 = vmatprep.subr.bf16.mxu0 0
        %1280 = vmatpush1.bf16.xpose.msra.mxu0 0
        %1281 = vmatprep.subr.bf16.mxu0 0
        %1282 = vmatpush1.bf16.xpose.msra.mxu0 0
        %1283 = vmatprep.subr.bf16.mxu0 0
        %1284 = vmatpush1.bf16.xpose.msra.mxu0 0
        %1285 = vmatprep.subr.bf16.mxu0 0
        %1286 = vmatpush1.bf16.xpose.msra.mxu0 0
        %1287 = vmatprep.subr.bf16.mxu0 0
        %1288 = vmatpush1.bf16.xpose.msra.mxu0 %v1271
        %1289 = vmatprep.subr.bf16.mxu0 0
        %1290 = vmatpush2.bf16.xpose.msra.mxu0 0
        %1291 = vmatprep.subr.bf16.mxu0 0
        %1292 = vmatpush2.bf16.xpose.msra.mxu0 0
        %1293 = vmatprep.subr.bf16.mxu0 0
        %1294 = vmatpush2.bf16.xpose.msra.mxu0 0
        %1295 = vmatprep.subr.bf16.mxu0 0
        %1296 = vmatpush2.bf16.xpose.msra.mxu0 0
        %1297 = vmatprep.subr.bf16.mxu0 0
        %1298 = vmatpush2.bf16.xpose.msra.mxu0 0
        %1299 = vmatprep.subr.bf16.mxu0 0
        %1300 = vmatpush2.bf16.xpose.msra.mxu0 0
        %1301 = vmatprep.subr.bf16.mxu0 0
        %1302 = vmatpush2.bf16.xpose.msra.mxu0 0
        %1303 = vmatprep.subr.bf16.mxu0 0
        %1304 = vmatpush2.bf16.xpose.msra.mxu0 0
        %1305 = vmatprep.mubr.bf16.mxu0 0
        %1306 = vmatmul.mubr.bf16.gmra.mxu0 %v1268
        %v1307 = vpop.f32.mrf.mxu0
        %v1308 = vadd.f32 0.0, %v1307
        %v1309 = vpop.f32.mrf.mxu0
        %v1310 = vpop.f32.mrf.mxu0
        %v1311 = vpop.f32.mrf.mxu0
        %1312 = vdwg.mxu0
        %1313 = vrot.lane.b32.xlu0 %v723, 112
        %v1314 = vpop.permute.xlu0 %1313
        %1315 = vrot.lane.b32.xlu0 %v723, 80
        %v1316 = vpop.permute.xlu0 %1315
        %v1318 = vsel %vm727, %v1314, 0
        %v1321 = vsel %vm727, %v1316, 0
        %1323 = vmatprep.subr.bf16.mxu0 0
        %1324 = vmatpush1.bf16.xpose.msra.mxu0 0
        %1325 = vmatprep.subr.bf16.mxu0 0
        %1326 = vmatpush1.bf16.xpose.msra.mxu0 0
        %1327 = vmatprep.subr.bf16.mxu0 0
        %1328 = vmatpush1.bf16.xpose.msra.mxu0 0
        %1329 = vmatprep.subr.bf16.mxu0 0
        %1330 = vmatpush1.bf16.xpose.msra.mxu0 0
        %1331 = vmatprep.subr.bf16.mxu0 0
        %1332 = vmatpush1.bf16.xpose.msra.mxu0 0
        %1333 = vmatprep.subr.bf16.mxu0 0
        %1334 = vmatpush1.bf16.xpose.msra.mxu0 0
        %1335 = vmatprep.subr.bf16.mxu0 0
        %1336 = vmatpush1.bf16.xpose.msra.mxu0 0
        %1337 = vmatprep.subr.bf16.mxu0 0
        %1338 = vmatpush1.bf16.xpose.msra.mxu0 %v1321
        %1339 = vmatprep.subr.bf16.mxu0 0
        %1340 = vmatpush2.bf16.xpose.msra.mxu0 0
        %1341 = vmatprep.subr.bf16.mxu0 0
        %1342 = vmatpush2.bf16.xpose.msra.mxu0 0
        %1343 = vmatprep.subr.bf16.mxu0 0
        %1344 = vmatpush2.bf16.xpose.msra.mxu0 0
        %1345 = vmatprep.subr.bf16.mxu0 0
        %1346 = vmatpush2.bf16.xpose.msra.mxu0 0
        %1347 = vmatprep.subr.bf16.mxu0 0
        %1348 = vmatpush2.bf16.xpose.msra.mxu0 0
        %1349 = vmatprep.subr.bf16.mxu0 0
        %1350 = vmatpush2.bf16.xpose.msra.mxu0 0
        %1351 = vmatprep.subr.bf16.mxu0 0
        %1352 = vmatpush2.bf16.xpose.msra.mxu0 0
        %1353 = vmatprep.subr.bf16.mxu0 0
        %1354 = vmatpush2.bf16.xpose.msra.mxu0 0
        %1355 = vmatprep.mubr.bf16.mxu0 0
        %1356 = vmatmul.mubr.bf16.gmra.mxu0 %v1318
        %v1357 = vpop.f32.mrf.mxu0
        %v1358 = vadd.f32 0.0, %v1357
        %v1359 = vpop.f32.mrf.mxu0
        %v1360 = vpop.f32.mrf.mxu0
        %v1361 = vpop.f32.mrf.mxu0
        %1362 = vdwg.mxu0
        %v1363 = vsel %vm727, %v1308, -inf
        %1364 = vmax.xlane.f32.xlu0 %v1363
        %v1365 = vpop.xlane.xlu0 %1364
        %v1366 = vsel %vm727, %v1358, -inf
        %1367 = vmax.xlane.f32.xlu0 %v1366
        %v1368 = vpop.xlane.xlu0 %1367
        %v1369 = vsub.f32 %v1308, %v1365
        %v1370 = vsub.f32 %v1358, %v1368
        %v1371 = vmul.f32 %v1369, 1.442695
        %v1372 = vpow.pop %v1371
        %v1373 = vmul.f32 %v1370, 1.442695
        %v1374 = vpow.pop %v1373
        %v1375 = vsel %vm727, %v1372, 0.0
        %1376 = vadd.xlane.f32.xlu0 %v1375
        %v1377 = vpop.xlane.xlu0 %1376
        %v1378 = vsel %vm727, %v1374, 0.0
        %1379 = vadd.xlane.f32.xlu0 %v1378
        %v1380 = vpop.xlane.xlu0 %1379
        %v1381 = vrcp.pop %v1377
        %v1382 = vrcp.pop %v1380
        %v1383 = vmul.f32 %v1372, %v1381
        %v1384 = vmul.f32 %v1374, %v1382
        %v1385 = vpack.c.bf16 %v1383, %v1383
        %v1386 = vpack.c.bf16 %v1384, %v1384
        %1387 = vrot.lane.b32.xlu0 %v722, 48
        %v1388 = vpop.permute.xlu0 %1387
        %v1390 = vsel %vm727, %v1385, 0
        %v1393 = vsel %vm852, %v1388, 0
        %1395 = vmatprep.subr.bf16.mxu0 0
        %1396 = vmatpush1.bf16.msra.mxu0 0
        %1397 = vmatprep.subr.bf16.mxu0 0
        %1398 = vmatpush1.bf16.msra.mxu0 0
        %1399 = vmatprep.subr.bf16.mxu0 0
        %1400 = vmatpush1.bf16.msra.mxu0 0
        %1401 = vmatprep.subr.bf16.mxu0 0
        %1402 = vmatpush1.bf16.msra.mxu0 0
        %1403 = vmatprep.subr.bf16.mxu0 0
        %1404 = vmatpush1.bf16.msra.mxu0 0
        %1405 = vmatprep.subr.bf16.mxu0 0
        %1406 = vmatpush1.bf16.msra.mxu0 0
        %1407 = vmatprep.subr.bf16.mxu0 0
        %1408 = vmatpush1.bf16.msra.mxu0 0
        %1409 = vmatprep.subr.bf16.mxu0 0
        %1410 = vmatpush1.bf16.msra.mxu0 %v1393
        %1411 = vmatprep.subr.bf16.mxu0 0
        %1412 = vmatpush2.bf16.msra.mxu0 0
        %1413 = vmatprep.subr.bf16.mxu0 0
        %1414 = vmatpush2.bf16.msra.mxu0 0
        %1415 = vmatprep.subr.bf16.mxu0 0
        %1416 = vmatpush2.bf16.msra.mxu0 0
        %1417 = vmatprep.subr.bf16.mxu0 0
        %1418 = vmatpush2.bf16.msra.mxu0 0
        %1419 = vmatprep.subr.bf16.mxu0 0
        %1420 = vmatpush2.bf16.msra.mxu0 0
        %1421 = vmatprep.subr.bf16.mxu0 0
        %1422 = vmatpush2.bf16.msra.mxu0 0
        %1423 = vmatprep.subr.bf16.mxu0 0
        %1424 = vmatpush2.bf16.msra.mxu0 0
        %1425 = vmatprep.subr.bf16.mxu0 0
        %1426 = vmatpush2.bf16.msra.mxu0 0
        %1427 = vmatprep.mubr.bf16.mxu0 0
        %1428 = vmatmul.mubr.bf16.gmra.mxu0 %v1390
        %v1429 = vpop.f32.mrf.mxu0
        %v1430 = vadd.f32 0.0, %v1429
        %v1431 = vpop.f32.mrf.mxu0
        %v1432 = vpop.f32.mrf.mxu0
        %v1433 = vpop.f32.mrf.mxu0
        %1434 = vdwg.mxu0
        %1435 = vrot.lane.b32.xlu0 %v723, 48
        %v1436 = vpop.permute.xlu0 %1435
        %v1438 = vsel %vm727, %v1386, 0
        %v1441 = vsel %vm852, %v1436, 0
        %1443 = vmatprep.subr.bf16.mxu0 0
        %1444 = vmatpush1.bf16.msra.mxu0 0
        %1445 = vmatprep.subr.bf16.mxu0 0
        %1446 = vmatpush1.bf16.msra.mxu0 0
        %1447 = vmatprep.subr.bf16.mxu0 0
        %1448 = vmatpush1.bf16.msra.mxu0 0
        %1449 = vmatprep.subr.bf16.mxu0 0
        %1450 = vmatpush1.bf16.msra.mxu0 0
        %1451 = vmatprep.subr.bf16.mxu0 0
        %1452 = vmatpush1.bf16.msra.mxu0 0
        %1453 = vmatprep.subr.bf16.mxu0 0
        %1454 = vmatpush1.bf16.msra.mxu0 0
        %1455 = vmatprep.subr.bf16.mxu0 0
        %1456 = vmatpush1.bf16.msra.mxu0 0
        %1457 = vmatprep.subr.bf16.mxu0 0
        %1458 = vmatpush1.bf16.msra.mxu0 %v1441
        %1459 = vmatprep.subr.bf16.mxu0 0
        %1460 = vmatpush2.bf16.msra.mxu0 0
        %1461 = vmatprep.subr.bf16.mxu0 0
        %1462 = vmatpush2.bf16.msra.mxu0 0
        %1463 = vmatprep.subr.bf16.mxu0 0
        %1464 = vmatpush2.bf16.msra.mxu0 0
        %1465 = vmatprep.subr.bf16.mxu0 0
        %1466 = vmatpush2.bf16.msra.mxu0 0
        %1467 = vmatprep.subr.bf16.mxu0 0
        %1468 = vmatpush2.bf16.msra.mxu0 0
        %1469 = vmatprep.subr.bf16.mxu0 0
        %1470 = vmatpush2.bf16.msra.mxu0 0
        %1471 = vmatprep.subr.bf16.mxu0 0
        %1472 = vmatpush2.bf16.msra.mxu0 0
        %1473 = vmatprep.subr.bf16.mxu0 0
        %1474 = vmatpush2.bf16.msra.mxu0 0
        %1475 = vmatprep.mubr.bf16.mxu0 0
        %1476 = vmatmul.mubr.bf16.gmra.mxu0 %v1438
        %v1477 = vpop.f32.mrf.mxu0
        %v1478 = vadd.f32 0.0, %v1477
        %v1479 = vpop.f32.mrf.mxu0
        %v1480 = vpop.f32.mrf.mxu0
        %v1481 = vpop.f32.mrf.mxu0
        %1482 = vdwg.mxu0
        %v1483 = vpack.c.bf16 %v1478, %v1430
        %s1484 = scalar_lea.vmem %s608, 8
        %v1485 = vld [vmem:[%s1484] sm:$0xf]
        %v1487 = vsel %vm727, %v1483, 0
        %v1490 = vsel %vm852, %v1485, 0
        %1492 = vmatprep.subr.bf16.mxu0 0
        %1493 = vmatpush1.bf16.msra.mxu0 0
        %1494 = vmatprep.subr.bf16.mxu0 0
        %1495 = vmatpush1.bf16.msra.mxu0 0
        %1496 = vmatprep.subr.bf16.mxu0 0
        %1497 = vmatpush1.bf16.msra.mxu0 0
        %1498 = vmatprep.subr.bf16.mxu0 0
        %1499 = vmatpush1.bf16.msra.mxu0 0
        %1500 = vmatprep.subr.bf16.mxu0 0
        %1501 = vmatpush1.bf16.msra.mxu0 0
        %1502 = vmatprep.subr.bf16.mxu0 0
        %1503 = vmatpush1.bf16.msra.mxu0 0
        %1504 = vmatprep.subr.bf16.mxu0 0
        %1505 = vmatpush1.bf16.msra.mxu0 0
        %1506 = vmatprep.subr.bf16.mxu0 0
        %1507 = vmatpush1.bf16.msra.mxu0 %v1490
        %1508 = vmatprep.subr.bf16.mxu0 0
        %1509 = vmatpush2.bf16.msra.mxu0 0
        %1510 = vmatprep.subr.bf16.mxu0 0
        %1511 = vmatpush2.bf16.msra.mxu0 0
        %1512 = vmatprep.subr.bf16.mxu0 0
        %1513 = vmatpush2.bf16.msra.mxu0 0
        %1514 = vmatprep.subr.bf16.mxu0 0
        %1515 = vmatpush2.bf16.msra.mxu0 0
        %1516 = vmatprep.subr.bf16.mxu0 0
        %1517 = vmatpush2.bf16.msra.mxu0 0
        %1518 = vmatprep.subr.bf16.mxu0 0
        %1519 = vmatpush2.bf16.msra.mxu0 0
        %1520 = vmatprep.subr.bf16.mxu0 0
        %1521 = vmatpush2.bf16.msra.mxu0 0
        %1522 = vmatprep.subr.bf16.mxu0 0
        %1523 = vmatpush2.bf16.msra.mxu0 0
        %1524 = vmatprep.mubr.bf16.mxu0 0
        %1525 = vmatmul.mubr.bf16.gmra.mxu0 %v1487
        %v1526 = vpop.f32.mrf.mxu0
        %v1527 = vadd.f32 0.0, %v1526
        %v1528 = vpop.f32.mrf.mxu0
        %v1529 = vpop.f32.mrf.mxu0
        %v1530 = vadd.f32 0.0, %v1529
        %v1531 = vpop.f32.mrf.mxu0
        %1532 = vdwg.mxu0
        %v1533 = vadd.f32 %v1257, %v1527
        %v1534 = vadd.f32 %v1260, %v1530
        %1535 = vrot.lane.b32.xlu0 %v722, 104
        %v1536 = vpop.permute.xlu0 %1535
        %1537 = vrot.lane.b32.xlu0 %v722, 72
        %v1538 = vpop.permute.xlu0 %1537
        %v1540 = vsel %vm727, %v1536, 0
        %v1543 = vsel %vm727, %v1538, 0
        %1545 = vmatprep.subr.bf16.mxu0 0
        %1546 = vmatpush1.bf16.xpose.msra.mxu0 0
        %1547 = vmatprep.subr.bf16.mxu0 0
        %1548 = vmatpush1.bf16.xpose.msra.mxu0 0
        %1549 = vmatprep.subr.bf16.mxu0 0
        %1550 = vmatpush1.bf16.xpose.msra.mxu0 0
        %1551 = vmatprep.subr.bf16.mxu0 0
        %1552 = vmatpush1.bf16.xpose.msra.mxu0 0
        %1553 = vmatprep.subr.bf16.mxu0 0
        %1554 = vmatpush1.bf16.xpose.msra.mxu0 0
        %1555 = vmatprep.subr.bf16.mxu0 0
        %1556 = vmatpush1.bf16.xpose.msra.mxu0 0
        %1557 = vmatprep.subr.bf16.mxu0 0
        %1558 = vmatpush1.bf16.xpose.msra.mxu0 0
        %1559 = vmatprep.subr.bf16.mxu0 0
        %1560 = vmatpush1.bf16.xpose.msra.mxu0 %v1543
        %1561 = vmatprep.subr.bf16.mxu0 0
        %1562 = vmatpush2.bf16.xpose.msra.mxu0 0
        %1563 = vmatprep.subr.bf16.mxu0 0
        %1564 = vmatpush2.bf16.xpose.msra.mxu0 0
        %1565 = vmatprep.subr.bf16.mxu0 0
        %1566 = vmatpush2.bf16.xpose.msra.mxu0 0
        %1567 = vmatprep.subr.bf16.mxu0 0
        %1568 = vmatpush2.bf16.xpose.msra.mxu0 0
        %1569 = vmatprep.subr.bf16.mxu0 0
        %1570 = vmatpush2.bf16.xpose.msra.mxu0 0
        %1571 = vmatprep.subr.bf16.mxu0 0
        %1572 = vmatpush2.bf16.xpose.msra.mxu0 0
        %1573 = vmatprep.subr.bf16.mxu0 0
        %1574 = vmatpush2.bf16.xpose.msra.mxu0 0
        %1575 = vmatprep.subr.bf16.mxu0 0
        %1576 = vmatpush2.bf16.xpose.msra.mxu0 0
        %1577 = vmatprep.mubr.bf16.mxu0 0
        %1578 = vmatmul.mubr.bf16.gmra.mxu0 %v1540
        %v1579 = vpop.f32.mrf.mxu0
        %v1580 = vadd.f32 0.0, %v1579
        %v1581 = vpop.f32.mrf.mxu0
        %v1582 = vpop.f32.mrf.mxu0
        %v1583 = vpop.f32.mrf.mxu0
        %1584 = vdwg.mxu0
        %1585 = vrot.lane.b32.xlu0 %v723, 104
        %v1586 = vpop.permute.xlu0 %1585
        %1587 = vrot.lane.b32.xlu0 %v723, 72
        %v1588 = vpop.permute.xlu0 %1587
        %v1590 = vsel %vm727, %v1586, 0
        %v1593 = vsel %vm727, %v1588, 0
        %1595 = vmatprep.subr.bf16.mxu0 0
        %1596 = vmatpush1.bf16.xpose.msra.mxu0 0
        %1597 = vmatprep.subr.bf16.mxu0 0
        %1598 = vmatpush1.bf16.xpose.msra.mxu0 0
        %1599 = vmatprep.subr.bf16.mxu0 0
        %1600 = vmatpush1.bf16.xpose.msra.mxu0 0
        %1601 = vmatprep.subr.bf16.mxu0 0
        %1602 = vmatpush1.bf16.xpose.msra.mxu0 0
        %1603 = vmatprep.subr.bf16.mxu0 0
        %1604 = vmatpush1.bf16.xpose.msra.mxu0 0
        %1605 = vmatprep.subr.bf16.mxu0 0
        %1606 = vmatpush1.bf16.xpose.msra.mxu0 0
        %1607 = vmatprep.subr.bf16.mxu0 0
        %1608 = vmatpush1.bf16.xpose.msra.mxu0 0
        %1609 = vmatprep.subr.bf16.mxu0 0
        %1610 = vmatpush1.bf16.xpose.msra.mxu0 %v1593
        %1611 = vmatprep.subr.bf16.mxu0 0
        %1612 = vmatpush2.bf16.xpose.msra.mxu0 0
        %1613 = vmatprep.subr.bf16.mxu0 0
        %1614 = vmatpush2.bf16.xpose.msra.mxu0 0
        %1615 = vmatprep.subr.bf16.mxu0 0
        %1616 = vmatpush2.bf16.xpose.msra.mxu0 0
        %1617 = vmatprep.subr.bf16.mxu0 0
        %1618 = vmatpush2.bf16.xpose.msra.mxu0 0
        %1619 = vmatprep.subr.bf16.mxu0 0
        %1620 = vmatpush2.bf16.xpose.msra.mxu0 0
        %1621 = vmatprep.subr.bf16.mxu0 0
        %1622 = vmatpush2.bf16.xpose.msra.mxu0 0
        %1623 = vmatprep.subr.bf16.mxu0 0
        %1624 = vmatpush2.bf16.xpose.msra.mxu0 0
        %1625 = vmatprep.subr.bf16.mxu0 0
        %1626 = vmatpush2.bf16.xpose.msra.mxu0 0
        %1627 = vmatprep.mubr.bf16.mxu0 0
        %1628 = vmatmul.mubr.bf16.gmra.mxu0 %v1590
        %v1629 = vpop.f32.mrf.mxu0
        %v1630 = vadd.f32 0.0, %v1629
        %v1631 = vpop.f32.mrf.mxu0
        %v1632 = vpop.f32.mrf.mxu0
        %v1633 = vpop.f32.mrf.mxu0
        %1634 = vdwg.mxu0
        %v1635 = vsel %vm727, %v1580, -inf
        %1636 = vmax.xlane.f32.xlu0 %v1635
        %v1637 = vpop.xlane.xlu0 %1636
        %v1638 = vsel %vm727, %v1630, -inf
        %1639 = vmax.xlane.f32.xlu0 %v1638
        %v1640 = vpop.xlane.xlu0 %1639
        %v1641 = vsub.f32 %v1580, %v1637
        %v1642 = vsub.f32 %v1630, %v1640
        %v1643 = vmul.f32 %v1641, 1.442695
        %v1644 = vpow.pop %v1643
        %v1645 = vmul.f32 %v1642, 1.442695
        %v1646 = vpow.pop %v1645
        %v1647 = vsel %vm727, %v1644, 0.0
        %1648 = vadd.xlane.f32.xlu0 %v1647
        %v1649 = vpop.xlane.xlu0 %1648
        %v1650 = vsel %vm727, %v1646, 0.0
        %1651 = vadd.xlane.f32.xlu0 %v1650
        %v1652 = vpop.xlane.xlu0 %1651
        %v1653 = vrcp.pop %v1649
        %v1654 = vrcp.pop %v1652
        %v1655 = vmul.f32 %v1644, %v1653
        %v1656 = vmul.f32 %v1646, %v1654
        %v1657 = vpack.c.bf16 %v1655, %v1655
        %v1658 = vpack.c.bf16 %v1656, %v1656
        %1659 = vrot.lane.b32.xlu0 %v722, 40
        %v1660 = vpop.permute.xlu0 %1659
        %v1662 = vsel %vm727, %v1657, 0
        %v1665 = vsel %vm852, %v1660, 0
        %1667 = vmatprep.subr.bf16.mxu0 0
        %1668 = vmatpush1.bf16.msra.mxu0 0
        %1669 = vmatprep.subr.bf16.mxu0 0
        %1670 = vmatpush1.bf16.msra.mxu0 0
        %1671 = vmatprep.subr.bf16.mxu0 0
        %1672 = vmatpush1.bf16.msra.mxu0 0
        %1673 = vmatprep.subr.bf16.mxu0 0
        %1674 = vmatpush1.bf16.msra.mxu0 0
        %1675 = vmatprep.subr.bf16.mxu0 0
        %1676 = vmatpush1.bf16.msra.mxu0 0
        %1677 = vmatprep.subr.bf16.mxu0 0
        %1678 = vmatpush1.bf16.msra.mxu0 0
        %1679 = vmatprep.subr.bf16.mxu0 0
        %1680 = vmatpush1.bf16.msra.mxu0 0
        %1681 = vmatprep.subr.bf16.mxu0 0
        %1682 = vmatpush1.bf16.msra.mxu0 %v1665
        %1683 = vmatprep.subr.bf16.mxu0 0
        %1684 = vmatpush2.bf16.msra.mxu0 0
        %1685 = vmatprep.subr.bf16.mxu0 0
        %1686 = vmatpush2.bf16.msra.mxu0 0
        %1687 = vmatprep.subr.bf16.mxu0 0
        %1688 = vmatpush2.bf16.msra.mxu0 0
        %1689 = vmatprep.subr.bf16.mxu0 0
        %1690 = vmatpush2.bf16.msra.mxu0 0
        %1691 = vmatprep.subr.bf16.mxu0 0
        %1692 = vmatpush2.bf16.msra.mxu0 0
        %1693 = vmatprep.subr.bf16.mxu0 0
        %1694 = vmatpush2.bf16.msra.mxu0 0
        %1695 = vmatprep.subr.bf16.mxu0 0
        %1696 = vmatpush2.bf16.msra.mxu0 0
        %1697 = vmatprep.subr.bf16.mxu0 0
        %1698 = vmatpush2.bf16.msra.mxu0 0
        %1699 = vmatprep.mubr.bf16.mxu0 0
        %1700 = vmatmul.mubr.bf16.gmra.mxu0 %v1662
        %v1701 = vpop.f32.mrf.mxu0
        %v1702 = vadd.f32 0.0, %v1701
        %v1703 = vpop.f32.mrf.mxu0
        %v1704 = vpop.f32.mrf.mxu0
        %v1705 = vpop.f32.mrf.mxu0
        %1706 = vdwg.mxu0
        %1707 = vrot.lane.b32.xlu0 %v723, 40
        %v1708 = vpop.permute.xlu0 %1707
        %v1710 = vsel %vm727, %v1658, 0
        %v1713 = vsel %vm852, %v1708, 0
        %1715 = vmatprep.subr.bf16.mxu0 0
        %1716 = vmatpush1.bf16.msra.mxu0 0
        %1717 = vmatprep.subr.bf16.mxu0 0
        %1718 = vmatpush1.bf16.msra.mxu0 0
        %1719 = vmatprep.subr.bf16.mxu0 0
        %1720 = vmatpush1.bf16.msra.mxu0 0
        %1721 = vmatprep.subr.bf16.mxu0 0
        %1722 = vmatpush1.bf16.msra.mxu0 0
        %1723 = vmatprep.subr.bf16.mxu0 0
        %1724 = vmatpush1.bf16.msra.mxu0 0
        %1725 = vmatprep.subr.bf16.mxu0 0
        %1726 = vmatpush1.bf16.msra.mxu0 0
        %1727 = vmatprep.subr.bf16.mxu0 0
        %1728 = vmatpush1.bf16.msra.mxu0 0
        %1729 = vmatprep.subr.bf16.mxu0 0
        %1730 = vmatpush1.bf16.msra.mxu0 %v1713
        %1731 = vmatprep.subr.bf16.mxu0 0
        %1732 = vmatpush2.bf16.msra.mxu0 0
        %1733 = vmatprep.subr.bf16.mxu0 0
        %1734 = vmatpush2.bf16.msra.mxu0 0
        %1735 = vmatprep.subr.bf16.mxu0 0
        %1736 = vmatpush2.bf16.msra.mxu0 0
        %1737 = vmatprep.subr.bf16.mxu0 0
        %1738 = vmatpush2.bf16.msra.mxu0 0
        %1739 = vmatprep.subr.bf16.mxu0 0
        %1740 = vmatpush2.bf16.msra.mxu0 0
        %1741 = vmatprep.subr.bf16.mxu0 0
        %1742 = vmatpush2.bf16.msra.mxu0 0
        %1743 = vmatprep.subr.bf16.mxu0 0
        %1744 = vmatpush2.bf16.msra.mxu0 0
        %1745 = vmatprep.subr.bf16.mxu0 0
        %1746 = vmatpush2.bf16.msra.mxu0 0
        %1747 = vmatprep.mubr.bf16.mxu0 0
        %1748 = vmatmul.mubr.bf16.gmra.mxu0 %v1710
        %v1749 = vpop.f32.mrf.mxu0
        %v1750 = vadd.f32 0.0, %v1749
        %v1751 = vpop.f32.mrf.mxu0
        %v1752 = vpop.f32.mrf.mxu0
        %v1753 = vpop.f32.mrf.mxu0
        %1754 = vdwg.mxu0
        %v1755 = vpack.c.bf16 %v1750, %v1702
        %s1756 = scalar_lea.vmem %s608, 12
        %v1757 = vld [vmem:[%s1756] sm:$0xf]
        %v1759 = vsel %vm727, %v1755, 0
        %v1762 = vsel %vm852, %v1757, 0
        %1764 = vmatprep.subr.bf16.mxu0 0
        %1765 = vmatpush1.bf16.msra.mxu0 0
        %1766 = vmatprep.subr.bf16.mxu0 0
        %1767 = vmatpush1.bf16.msra.mxu0 0
        %1768 = vmatprep.subr.bf16.mxu0 0
        %1769 = vmatpush1.bf16.msra.mxu0 0
        %1770 = vmatprep.subr.bf16.mxu0 0
        %1771 = vmatpush1.bf16.msra.mxu0 0
        %1772 = vmatprep.subr.bf16.mxu0 0
        %1773 = vmatpush1.bf16.msra.mxu0 0
        %1774 = vmatprep.subr.bf16.mxu0 0
        %1775 = vmatpush1.bf16.msra.mxu0 0
        %1776 = vmatprep.subr.bf16.mxu0 0
        %1777 = vmatpush1.bf16.msra.mxu0 0
        %1778 = vmatprep.subr.bf16.mxu0 0
        %1779 = vmatpush1.bf16.msra.mxu0 %v1762
        %1780 = vmatprep.subr.bf16.mxu0 0
        %1781 = vmatpush2.bf16.msra.mxu0 0
        %1782 = vmatprep.subr.bf16.mxu0 0
        %1783 = vmatpush2.bf16.msra.mxu0 0
        %1784 = vmatprep.subr.bf16.mxu0 0
        %1785 = vmatpush2.bf16.msra.mxu0 0
        %1786 = vmatprep.subr.bf16.mxu0 0
        %1787 = vmatpush2.bf16.msra.mxu0 0
        %1788 = vmatprep.subr.bf16.mxu0 0
        %1789 = vmatpush2.bf16.msra.mxu0 0
        %1790 = vmatprep.subr.bf16.mxu0 0
        %1791 = vmatpush2.bf16.msra.mxu0 0
        %1792 = vmatprep.subr.bf16.mxu0 0
        %1793 = vmatpush2.bf16.msra.mxu0 0
        %1794 = vmatprep.subr.bf16.mxu0 0
        %1795 = vmatpush2.bf16.msra.mxu0 0
        %1796 = vmatprep.mubr.bf16.mxu0 0
        %1797 = vmatmul.mubr.bf16.gmra.mxu0 %v1759
        %v1798 = vpop.f32.mrf.mxu0
        %v1799 = vadd.f32 0.0, %v1798
        %v1800 = vpop.f32.mrf.mxu0
        %v1801 = vpop.f32.mrf.mxu0
        %v1802 = vadd.f32 0.0, %v1801
        %v1803 = vpop.f32.mrf.mxu0
        %1804 = vdwg.mxu0
        %v1805 = vadd.f32 %v1533, %v1799
        %v1806 = vadd.f32 %v1534, %v1802
        %v1807 = vld [vmem:[%s611] sm:$0x1]
        %v1809 = vlaneseq
        %v1810 = vshrl.u32 %v1809, 7
        %v1811 = vsub.s32 0, %v1810
        %v1812 = vrot.slane %v1807, %v1811
        %v1814 = vadd.f32 %v1805, %v1812
        %v1815 = vadd.f32 %v1806, %v1812
        %v1816 = vadd.f32 %v651, %v1814
        %v1817 = vadd.f32 %v652, %v1815
        %v1818 = vsel %vm677, %v1816, 0.0
        %1819 = vadd.xlane.f32.xlu0 %v1818
        %v1820 = vpop.xlane.xlu0 %1819
        %v1821 = vsel %vm677, %v1817, 0.0
        %1822 = vadd.xlane.f32.xlu0 %v1821
        %v1823 = vpop.xlane.xlu0 %1822
        %v1824 = vrcp.pop 32.0
        %v1825 = vmul.f32 %v1820, %v1824
        %v1826 = vmul.f32 %v1823, %v1824
        %v1827 = vsub.f32 %v1816, %v1825
        %v1828 = vsub.f32 %v1817, %v1826
        %v1829 = vmul.f32 %v1827, %v1827
        %v1830 = vmul.f32 %v1828, %v1828
        %v1831 = vsel %vm677, %v1829, 0.0
        %1832 = vadd.xlane.f32.xlu0 %v1831
        %v1833 = vpop.xlane.xlu0 %1832
        %v1834 = vsel %vm677, %v1830, 0.0
        %1835 = vadd.xlane.f32.xlu0 %v1834
        %v1836 = vpop.xlane.xlu0 %1835
        %v1837 = vmul.f32 %v1833, %v1824
        %v1838 = vmul.f32 %v1836, %v1824
        %v1839 = vadd.f32 %v1837, 1e-05
        %v1840 = vadd.f32 %v1838, 1e-05
        %v1841 = vrsqrt.pop %v1839
        %v1842 = vrsqrt.pop %v1840
        %v1843 = vmul.f32 %v1827, %v1841
        %v1844 = vmul.f32 %v1828, %v1842
        %v1845 = vld [vmem:[%s614] sm:$0x1]
        %v1847 = vlaneseq
        %v1848 = vshrl.u32 %v1847, 7
        %v1849 = vsub.s32 0, %v1848
        %v1850 = vrot.slane %v1845, %v1849
        %v1852 = vmul.f32 %v1843, %v1850
        %v1853 = vmul.f32 %v1844, %v1850
        %v1854 = vld [vmem:[%s617] sm:$0x1]
        %v1856 = vlaneseq
        %v1857 = vshrl.u32 %v1856, 7
        %v1858 = vsub.s32 0, %v1857
        %v1859 = vrot.slane %v1854, %v1858
        %v1861 = vadd.f32 %v1852, %v1859
        %v1862 = vadd.f32 %v1853, %v1859
        %v1863 = vpack.c.bf16 %v1862, %v1861
        %v1864 = vld [vmem:[%s622] sm:$0xf]
        %v1865 = vld [vmem:[%s622 + $0x4] sm:$0xf]
        %v1866 = vld [vmem:[%s622 + $0x8] sm:$0xf]
        %v1867 = vld [vmem:[%s622 + $0xc] sm:$0xf]
        %v1868 = vld [vmem:[%s625] sm:$0x1]
        %v1870 = vlaneseq
        %v1871 = vshrl.u32 %v1870, 7
        %v1872 = vsub.s32 0, %v1871
        %v1873 = vrot.slane %v1868, %v1872
        %v1879 = vunpack.c.l.b16 %v1864
        %v1880 = vunpack.c.l.b16 %v1865
        %v1881 = vunpack.c.l.b16 %v1866
        %v1882 = vunpack.c.l.b16 %v1867
        %v1883 = vpack.c.b16 %v1880, %v1879
        %v1884 = vpack.c.b16 %v1882, %v1881
        %v1888 = vsel %vm677, %v1863, 0
        %1890 = vmatprep.subr.bf16.mxu0 0
        %1891 = vmatpush1.bf16.msra.mxu0 0
        %1892 = vmatprep.subr.bf16.mxu0 0
        %1893 = vmatpush1.bf16.msra.mxu0 0
        %1894 = vmatprep.subr.bf16.mxu0 0
        %1895 = vmatpush1.bf16.msra.mxu0 0
        %1896 = vmatprep.subr.bf16.mxu0 0
        %1897 = vmatpush1.bf16.msra.mxu0 0
        %1898 = vmatprep.subr.bf16.mxu0 0
        %1899 = vmatpush1.bf16.msra.mxu0 0
        %1900 = vmatprep.subr.bf16.mxu0 0
        %1901 = vmatpush1.bf16.msra.mxu0 0
        %1902 = vmatprep.subr.bf16.mxu0 0
        %1903 = vmatpush1.bf16.msra.mxu0 %v1884
        %1904 = vmatprep.subr.bf16.mxu0 0
        %1905 = vmatpush1.bf16.msra.mxu0 %v1883
        %1906 = vmatprep.subr.bf16.mxu0 0
        %1907 = vmatpush2.bf16.msra.mxu0 0
        %1908 = vmatprep.subr.bf16.mxu0 0
        %1909 = vmatpush2.bf16.msra.mxu0 0
        %1910 = vmatprep.subr.bf16.mxu0 0
        %1911 = vmatpush2.bf16.msra.mxu0 0
        %1912 = vmatprep.subr.bf16.mxu0 0
        %1913 = vmatpush2.bf16.msra.mxu0 0
        %1914 = vmatprep.subr.bf16.mxu0 0
        %1915 = vmatpush2.bf16.msra.mxu0 0
        %1916 = vmatprep.subr.bf16.mxu0 0
        %1917 = vmatpush2.bf16.msra.mxu0 0
        %1918 = vmatprep.subr.bf16.mxu0 0
        %1919 = vmatpush2.bf16.msra.mxu0 0
        %1920 = vmatprep.subr.bf16.mxu0 0
        %1921 = vmatpush2.bf16.msra.mxu0 0
        %1922 = vmatprep.mubr.bf16.mxu0 0
        %1923 = vmatmul.mubr.bf16.gmra.mxu0 %v1888
        %v1924 = vpop.f32.mrf.mxu0
        %v1925 = vadd.f32 %v1873, %v1924
        %v1926 = vpop.f32.mrf.mxu0
        %v1927 = vpop.f32.mrf.mxu0
        %v1928 = vadd.f32 %v1873, %v1927
        %v1929 = vpop.f32.mrf.mxu0
        %1930 = vdwg.mxu0
        %v1931 = vmax.f32 %v1925, 0.0
        %v1932 = vmax.f32 %v1928, 0.0
        %v1933 = vpack.c.bf16 %v1932, %v1931
        %v1934 = vld [vmem:[%s630] sm:$0xf]
        %v1935 = vld [vmem:[%s630 + $0x4] sm:$0xf]
        %v1936 = vld [vmem:[%s630 + $0x8] sm:$0xf]
        %v1937 = vld [vmem:[%s630 + $0xc] sm:$0xf]
        %v1938 = vld [vmem:[%s630 + $0x10] sm:$0xf]
        %v1939 = vld [vmem:[%s630 + $0x14] sm:$0xf]
        %v1940 = vld [vmem:[%s630 + $0x18] sm:$0xf]
        %v1941 = vld [vmem:[%s630 + $0x1c] sm:$0xf]
        %v1942 = vld [vmem:[%s633] sm:$0x1]
        %v1944 = vlaneseq
        %v1945 = vshrl.u32 %v1944, 7
        %v1946 = vsub.s32 0, %v1945
        %v1947 = vrot.slane %v1942, %v1946
        %v1957 = vunpack.c.l.b16 %v1934
        %v1958 = vunpack.c.l.b16 %v1935
        %v1959 = vunpack.c.l.b16 %v1936
        %v1960 = vunpack.c.l.b16 %v1937
        %v1961 = vunpack.c.l.b16 %v1938
        %v1962 = vunpack.c.l.b16 %v1939
        %v1963 = vunpack.c.l.b16 %v1940
        %v1964 = vunpack.c.l.b16 %v1941
        %v1965 = vpack.c.b16 %v1958, %v1957
        %v1966 = vpack.c.b16 %v1960, %v1959
        %v1967 = vpack.c.b16 %v1962, %v1961
        %v1968 = vpack.c.b16 %v1964, %v1963
        %vm1973 = vcmask 523264
        %v1975 = vsel %vm1973, %v1933, 0
        %1977 = vmatprep.subr.bf16.mxu0 0
        %1978 = vmatpush1.bf16.msra.mxu0 0
        %1979 = vmatprep.subr.bf16.mxu0 0
        %1980 = vmatpush1.bf16.msra.mxu0 0
        %1981 = vmatprep.subr.bf16.mxu0 0
        %1982 = vmatpush1.bf16.msra.mxu0 0
        %1983 = vmatprep.subr.bf16.mxu0 0
        %1984 = vmatpush1.bf16.msra.mxu0 0
        %1985 = vmatprep.subr.bf16.mxu0 0
        %1986 = vmatpush1.bf16.msra.mxu0 %v1968
        %1987 = vmatprep.subr.bf16.mxu0 0
        %1988 = vmatpush1.bf16.msra.mxu0 %v1967
        %1989 = vmatprep.subr.bf16.mxu0 0
        %1990 = vmatpush1.bf16.msra.mxu0 %v1966
        %1991 = vmatprep.subr.bf16.mxu0 0
        %1992 = vmatpush1.bf16.msra.mxu0 %v1965
        %1993 = vmatprep.subr.bf16.mxu0 0
        %1994 = vmatpush2.bf16.msra.mxu0 0
        %1995 = vmatprep.subr.bf16.mxu0 0
        %1996 = vmatpush2.bf16.msra.mxu0 0
        %1997 = vmatprep.subr.bf16.mxu0 0
        %1998 = vmatpush2.bf16.msra.mxu0 0
        %1999 = vmatprep.subr.bf16.mxu0 0
        %2000 = vmatpush2.bf16.msra.mxu0 0
        %2001 = vmatprep.subr.bf16.mxu0 0
        %2002 = vmatpush2.bf16.msra.mxu0 0
        %2003 = vmatprep.subr.bf16.mxu0 0
        %2004 = vmatpush2.bf16.msra.mxu0 0
        %2005 = vmatprep.subr.bf16.mxu0 0
        %2006 = vmatpush2.bf16.msra.mxu0 0
        %2007 = vmatprep.subr.bf16.mxu0 0
        %2008 = vmatpush2.bf16.msra.mxu0 0
        %2009 = vmatprep.mubr.bf16.mxu0 0
        %2010 = vmatmul.mubr.bf16.gmra.mxu0 %v1975
        %v2011 = vpop.f32.mrf.mxu0
        %v2012 = vadd.f32 %v1947, %v2011
        %v2013 = vpop.f32.mrf.mxu0
        %v2014 = vpop.f32.mrf.mxu0
        %v2015 = vadd.f32 %v1947, %v2014
        %v2016 = vpop.f32.mrf.mxu0
        %2017 = vdwg.mxu0
        %v2018 = vadd.f32 %v2012, %v1861
        %v2019 = vadd.f32 %v2015, %v1862
        %v2020 = vsel %vm677, %v2018, 0.0
        %2021 = vadd.xlane.f32.xlu0 %v2020
        %v2022 = vpop.xlane.xlu0 %2021
        %v2023 = vsel %vm677, %v2019, 0.0
        %2024 = vadd.xlane.f32.xlu0 %v2023
        %v2025 = vpop.xlane.xlu0 %2024
        %v2026 = vmul.f32 %v2022, %v1824
        %v2027 = vmul.f32 %v2025, %v1824
        %v2028 = vsub.f32 %v2018, %v2026
        %v2029 = vsub.f32 %v2019, %v2027
        %v2030 = vmul.f32 %v2028, %v2028
        %v2031 = vmul.f32 %v2029, %v2029
        %v2032 = vsel %vm677, %v2030, 0.0
        %2033 = vadd.xlane.f32.xlu0 %v2032
        %v2034 = vpop.xlane.xlu0 %2033
        %v2035 = vsel %vm677, %v2031, 0.0
        %2036 = vadd.xlane.f32.xlu0 %v2035
        %v2037 = vpop.xlane.xlu0 %2036
        %v2038 = vmul.f32 %v2034, %v1824
        %v2039 = vmul.f32 %v2037, %v1824
        %v2040 = vadd.f32 %v2038, 1e-05
        %v2041 = vadd.f32 %v2039, 1e-05
        %v2042 = vrsqrt.pop %v2040
        %v2043 = vrsqrt.pop %v2041
        %v2044 = vmul.f32 %v2028, %v2042
        %v2045 = vmul.f32 %v2029, %v2043
        %v2046 = vld [vmem:[%s636] sm:$0x1]
        %v2048 = vlaneseq
        %v2049 = vshrl.u32 %v2048, 7
        %v2050 = vsub.s32 0, %v2049
        %v2051 = vrot.slane %v2046, %v2050
        %v2053 = vmul.f32 %v2044, %v2051
        %v2054 = vmul.f32 %v2045, %v2051
        %v2055 = vld [vmem:[%s639] sm:$0x1]
        %v2057 = vlaneseq
        %v2058 = vshrl.u32 %v2057, 7
        %v2059 = vsub.s32 0, %v2058
        %v2060 = vrot.slane %v2055, %v2059
        %v2062 = vadd.f32 %v2053, %v2060
        %v2063 = vadd.f32 %v2054, %v2060
        %2064 = vst.msk [vmem:[#allocation2] sm:$0xff] %vm677, %v2062
        %2065 = vst.msk [vmem:[#allocation2 + $0x8] sm:$0xff] %vm677, %v2063
        %p2066 = scmp.eq.s32.totalorder %s31, 1
        // Predicated region
        $region81: #{tpu_custom_call.1} parent=71 // pred_check
          %p2067 = pneg %p2066
        $region82: #{tpu_custom_call.1} parent=71 // pred_check_branch
          %2069 = sbr.rel (%p2067) target = $region84
        $region83: #{tpu_custom_call.1} parent=71 // pred_region
          %2070 = vst.msk [vmem:[#allocation6] sm:$0xff] %vm677, %v2062
          %2071 = vst.msk [vmem:[#allocation6 + $0x8] sm:$0xff] %vm677, %v2063
        $region84: #{tpu_custom_call.1} parent=71 // pred_fallthru
          _
        // Predicated region
        $region85: #{tpu_custom_call.1} parent=71 // pred_check
          %p2072 = pneg %p394
        $region86: #{tpu_custom_call.1} parent=71 // pred_check_branch
          %2074 = sbr.rel (%p2072) target = $region88
        $region87: #{tpu_custom_call.1} parent=71 // pred_region
          %s2075 = smul.u32 2, %s30
          %s2077 = ssub.s32 256, 256
          %2078 = vsyncadd [#allocation5], %s2077
          %s2079 = smul.addr %s2075, 128
          %s2080 = scalar_lea.hbm %s13, %s2079
          %s2081 = sshll.u32 [#allocation6], 4
          %s2082 = int_to_ptr.vmem [resolvable:$true] %s2081
          %2087 = dma.vmem_to_hbm [thread:$0]  %s2082, 256, %s2080, [#allocation5], 128, 128, 8
        $region88: #{tpu_custom_call.1} parent=71 // pred_fallthru
          _
        // Predicated region
        $region89: #{tpu_custom_call.1} parent=71 // pred_check
          %p2088 = pneg %p394
        $region90: #{tpu_custom_call.1} parent=71 // pred_check_branch
          %2090 = sbr.rel (%p2088) target = $region92
        $region91: #{tpu_custom_call.1} parent=71 // pred_region
          %2091 = dma.done [#allocation5], 256
        $region92: #{tpu_custom_call.1} parent=71 // pred_fallthru
          _
      $region72: #{tpu_custom_call.1} parent=5 // pred_fallthru
        _
      %p2092 = scmp.le.s32.totalorder 2, %s21
      // Predicated region
      $region93: #{tpu_custom_call.1} parent=5 // pred_check
        %p2093 = pneg %p2092
      $region94: #{tpu_custom_call.1} parent=5 // pred_check_branch
        %2095 = sbr.rel (%p2093) target = $region96
      $region95: #{tpu_custom_call.1} parent=5 // pred_region
        %s2096 = ssub.s32 %s21, 2
      $region96: #{tpu_custom_call.1} parent=5 // pred_fallthru
        _
    $region6: #{tpu_custom_call.1} parent=1 // loop_footer
      %s25 = sadd.s32 1, %s21
    $region7: #{tpu_custom_call.1} parent=1 // loop_footer_branch
      %20 = sbr.rel target = $region3
    $region8: #{tpu_custom_call.1} parent=1 // loop_exit
      _
    %2097 = vsyncpa [#allocation4], 1
    %s2098 = scalar_lea.sflag [#allocation4], 1
    %2099 = vsyncpa %s2098, 1
    %2100 = vsyncpa [#allocation5], 1
    %s2101 = scalar_lea.sflag [#allocation5], 1
    %2102 = vsyncpa %s2101, 1

</llo_original>
